<compile_context>
chip_gen: v7x
topology: tpu7x:2x2x1
jax: 0.10.0
libtpu: 0.0.40
codegen_flags: <defaults>
</compile_context>

<pallas_src>
import functools

import jax
import jax.numpy as jnp
from jax.experimental import pallas as pl
from jax.experimental.pallas import tpu as pltpu


def trans_enh1_kernel(text_ref, visu_ref, mask_ref,
                      w1_ref, b1_ref, wv_ref, bv_ref,
                      w2_ref, b2_ref, w3a_ref, w3b_ref, b3_ref,
                      out_ref, *, n_visu):
    bb, nt, t_dim = text_ref.shape
    d = visu_ref.shape[-1]

    text = text_ref[...]                          # (Bb, Nt, T)
    visu = visu_ref[...]                          # (Bb, Nv, D)
    mask = mask_ref[...][:, 0, :]                 # (Bb, Nt) f32; 1 = valid non-CLS token

    w1 = w1_ref[...]; b1 = b1_ref[...]            # (T, D), (1, D)
    wv = wv_ref[...]; bv = bv_ref[...]            # (D, D), (1, D)
    w2 = w2_ref[...]; b2 = b2_ref[...]            # (T, D), (1, D)
    w3a = w3a_ref[...]; w3b = w3b_ref[...]        # (D, D), (D, D)
    b3 = b3_ref[...]                              # (1, D)

    # --- sum-over-Nv identity collapses both large matmuls --------------------
    # sum_v(text_p @ visu_p.T) == text_p @ ((sum_v visu) @ Wv.T + Nv * bv)
    vsum = jnp.sum(visu, axis=1)                                            # (Bb, D)
    vs_p = jnp.dot(vsum, wv, preferred_element_type=jnp.float32) + n_visu * bv

    # --- text projection: one MXU matmul over the flattened batch block -------
    text_p = (jnp.dot(text.reshape(bb * nt, t_dim), w1,
                      preferred_element_type=jnp.float32)
              + b1).reshape(bb, nt, d)                                      # (Bb, Nt, D)

    # --- attention logits, lane-dense (Bb, Nt) --------------------------------
    attn = jnp.sum(text_p * vs_p[:, None, :], axis=-1)                      # (Bb, Nt)

    # --- masked, L2-normalized softmax over text tokens (lane reductions) -----
    attn_new = attn * mask                      # CLS + padded slots -> 0
    # NOTE: l2 == 0 (every real token masked) yields NaN exactly like the
    # PyTorch reference; no extra guard added on purpose.
    l2 = jnp.sqrt(jnp.sum(attn_new * attn_new, axis=-1, keepdims=True))     # (Bb, 1)
    attn_exp = jnp.exp(attn_new * pl.reciprocal(l2, approx=True))           # (Bb, Nt)
    # Masked slots contribute exp(0)=1 exactly as the reference does; the CLS
    # slot is one extra exp(0)=1 the reference never sees -> subtract it.
    fenmu = jnp.sum(attn_exp, axis=-1, keepdims=True) - 1.0                 # (Bb, 1)
    chufa = attn_exp * pl.reciprocal(fenmu, approx=True) * mask             # (Bb, Nt)

    # --- attention-weighted pooling of the raw text features ------------------
    ls = jnp.sum(chufa[:, :, None] * text, axis=1)                          # (Bb, T)

    # --- gating head: t_proj2, concat-with-CLS folded into a split t_proj3 ----
    ls2 = jnp.dot(ls, w2, preferred_element_type=jnp.float32) + b2          # (Bb, D)
    cls_tok = text_p[:, 0, :]                                               # (Bb, D)
    lv = jax.nn.sigmoid(
        jnp.dot(ls2, w3a, preferred_element_type=jnp.float32)
        + jnp.dot(cls_tok, w3b, preferred_element_type=jnp.float32)
        + b3)                                                               # (Bb, D)

    # --- fused residual gate ---------------------------------------------------
    out_ref[...] = (visu * (1.0 + lv[:, None, :])).astype(out_ref.dtype)


def trans_enh1(visu_feat, text_feat, text_mask_bool, params, *, block_b=4):
    """Pallas wrapper.

    visu_feat (B, Nv, D) f32, text_feat (B, Nt, T) f32,
    text_mask_bool (B, Nt) bool (True = padded token).
    """
    B, Nv, D = visu_feat.shape
    _, Nt, T = text_feat.shape
    w1, b1, wv, bv, w2, b2, w3, b3 = params

    # Pre-transpose weights at trace time (free) so the kernel does plain x @ w.
    w1_t = w1.T                      # (T, D)
    wv_t = wv.T                      # (D, D)
    w2_t = w2.T                      # (T, D)
    w3a_t = w3[:, :D].T              # (D, D)  acts on t_proj2(ls)
    w3b_t = w3[:, D:].T              # (D, D)  acts on the CLS token
    b1 = b1.reshape(1, D)
    bv = bv.reshape(1, D)
    b2 = b2.reshape(1, D)
    b3 = b3.reshape(1, D)

    # Lane-dense combined mask: 1.0 for valid non-CLS tokens, 0.0 for pads + CLS.
    valid = jnp.where(text_mask_bool, 0.0, 1.0).astype(jnp.float32)         # (B, Nt)
    valid = valid.at[:, 0].set(0.0)
    mask_f = valid.reshape(B, 1, Nt)

    # Largest batch block <= block_b that divides B (amortizes per-step overhead).
    bb = max(1, min(block_b, B))
    while B % bb:
        bb -= 1
    grid = (B // bb,)

    kernel = functools.partial(trans_enh1_kernel, n_visu=float(Nv))

    out = pl.pallas_call(
        kernel,
        out_shape=jax.ShapeDtypeStruct((B, Nv, D), visu_feat.dtype),
        grid=grid,
        in_specs=[
            pl.BlockSpec((bb, Nt, T), lambda b: (b, 0, 0)),   # text_feat
            pl.BlockSpec((bb, Nv, D), lambda b: (b, 0, 0)),   # visu_feat
            pl.BlockSpec((bb, 1, Nt), lambda b: (b, 0, 0)),   # combined f32 mask
            pl.BlockSpec((T, D), lambda b: (0, 0)),           # t_proj1.weight.T
            pl.BlockSpec((1, D), lambda b: (0, 0)),           # t_proj1.bias
            pl.BlockSpec((D, D), lambda b: (0, 0)),           # v_proj1.weight.T
            pl.BlockSpec((1, D), lambda b: (0, 0)),           # v_proj1.bias
            pl.BlockSpec((T, D), lambda b: (0, 0)),           # t_proj2.weight.T
            pl.BlockSpec((1, D), lambda b: (0, 0)),           # t_proj2.bias
            pl.BlockSpec((D, D), lambda b: (0, 0)),           # t_proj3.weight[:, :D].T
            pl.BlockSpec((D, D), lambda b: (0, 0)),           # t_proj3.weight[:, D:].T
            pl.BlockSpec((1, D), lambda b: (0, 0)),           # t_proj3.bias
        ],
        out_specs=pl.BlockSpec((bb, Nv, D), lambda b: (b, 0, 0)),
        # Batch grid axis is embarrassingly parallel (matters on v7x's 2 TCs).
        compiler_params=pltpu.CompilerParams(
            dimension_semantics=("parallel",)),
    )(text_feat, visu_feat, mask_f,
      w1_t, b1, wv_t, bv, w2_t, b2, w3a_t, w3b_t, b3)
    return out


def ref_forward(visu, text, mask_bool, params):
    """Pure-JAX reference mirroring the PyTorch forward (keep_clas=True)."""
    w1, b1, wv, bv, w2, b2, w3, b3 = params
    mask_v = mask_bool[:, 1:]
    attn_mask = jnp.where(mask_v, 0.0, 1.0).astype(jnp.float32)
    text_p = text @ w1.T + b1
    text_w = text_p[:, 1:]
    visu_p = visu @ wv.T + bv
    attn = jnp.einsum('btd,bvd->btv', text_w, visu_p)
    attn = jnp.sum(attn, axis=2)
    attn_new = attn * attn_mask
    l2 = jnp.sqrt(jnp.sum(attn_new ** 2, axis=1, keepdims=True))
    attn_exp = jnp.exp(attn_new / l2)
    fenmu = jnp.sum(attn_exp, axis=1, keepdims=True)
    chufa = attn_exp / fenmu * attn_mask
    ls = jnp.sum(chufa[:, :, None] * text[:, 1:], axis=1, keepdims=True)
    cls = text_p[:, 0:1]
    ls = jnp.concatenate([ls @ w2.T + b2, cls], axis=2)
    lv = jax.nn.sigmoid(ls @ w3.T + b3)
    return visu + visu * lv


if __name__ == "__main__":
    key = jax.random.PRNGKey(0)
    B, Nv, Nt = 8, 16, 8          # batch, visual tokens, text tokens (incl. CLS)
    D, T = 128, 256               # d_model, t_model (small, lane-aligned)

    ks = jax.random.split(key, 8)
    visu = jax.random.normal(ks[0], (B, Nv, D), jnp.float32)
    text = jax.random.normal(ks[1], (B, Nt, T), jnp.float32)

    # mask: True = padded token; per-batch valid lengths (incl. CLS).
    lengths = jnp.array([6, 4, 8, 2, 5, 7, 3, 8])
    mask = jnp.arange(Nt)[None, :] >= lengths[:, None]   # (B, Nt) bool

    def init_linear(k, out_dim, in_dim):
        kw, kb = jax.random.split(k)
        bound = 1.0 / jnp.sqrt(in_dim)
        w = jax.random.uniform(kw, (out_dim, in_dim), jnp.float32, -bound, bound)
        b = jax.random.uniform(kb, (out_dim,), jnp.float32, -bound, bound)
        return w, b

    w1, b1 = init_linear(ks[2], D, T)        # t_proj1
    wv, bv = init_linear(ks[3], D, D)        # v_proj1
    w2, b2 = init_linear(ks[4], D, T)        # t_proj2
    w3, b3 = init_linear(ks[5], D, 2 * D)    # t_proj3 (keep_clas=True)
    params = (w1, b1, wv, bv, w2, b2, w3, b3)

    out = trans_enh1(visu, text, mask, params, block_b=4)
    out = jax.block_until_ready(out)

    ref = ref_forward(visu, text, mask, params)
    assert out.shape == ref.shape, (out.shape, ref.shape)
    max_err = float(jnp.max(jnp.abs(out - ref)))
    assert jnp.allclose(out, ref, rtol=2e-2, atol=2e-2), f"max_err={max_err}"

    print("KERNEL_OK")
</pallas_src>

<mosaic_0001>
module attributes {stable_mosaic.version = 11 : i64} {
  func.func @trans_enh1_kernel(%arg0: i32, %arg1: memref<4x8x256xf32, #tpu.memory_space<vmem>>, %arg2: memref<4x16x128xf32, #tpu.memory_space<vmem>>, %arg3: memref<4x1x8xf32, #tpu.memory_space<vmem>>, %arg4: memref<256x128xf32, #tpu.memory_space<vmem>>, %arg5: memref<1x128xf32, #tpu.memory_space<vmem>>, %arg6: memref<128x128xf32, #tpu.memory_space<vmem>>, %arg7: memref<1x128xf32, #tpu.memory_space<vmem>>, %arg8: memref<256x128xf32, #tpu.memory_space<vmem>>, %arg9: memref<1x128xf32, #tpu.memory_space<vmem>>, %arg10: memref<128x128xf32, #tpu.memory_space<vmem>>, %arg11: memref<128x128xf32, #tpu.memory_space<vmem>>, %arg12: memref<1x128xf32, #tpu.memory_space<vmem>>, %arg13: memref<4x16x128xf32, #tpu.memory_space<vmem>>) attributes {dimension_semantics = [#tpu.dimension_semantics<parallel>], iteration_bounds = array<i64: 2>, scalar_prefetch = 0 : i64, scratch_operands = 0 : i64, tpu.core_type = #tpu.core_type<tc>, window_params = [{transform_indices = @transform_0, window_bounds = array<i64: 4, 8, 256>}, {transform_indices = @transform_1, window_bounds = array<i64: 4, 16, 128>}, {transform_indices = @transform_2, window_bounds = array<i64: 4, 1, 8>}, {pipeline_mode = #tpu.pipeline_mode<synchronous>, transform_indices = @transform_3, window_bounds = array<i64: 256, 128>}, {pipeline_mode = #tpu.pipeline_mode<synchronous>, transform_indices = @transform_4, window_bounds = array<i64: 1, 128>}, {pipeline_mode = #tpu.pipeline_mode<synchronous>, transform_indices = @transform_5, window_bounds = array<i64: 128, 128>}, {pipeline_mode = #tpu.pipeline_mode<synchronous>, transform_indices = @transform_6, window_bounds = array<i64: 1, 128>}, {pipeline_mode = #tpu.pipeline_mode<synchronous>, transform_indices = @transform_7, window_bounds = array<i64: 256, 128>}, {pipeline_mode = #tpu.pipeline_mode<synchronous>, transform_indices = @transform_8, window_bounds = array<i64: 1, 128>}, {pipeline_mode = #tpu.pipeline_mode<synchronous>, transform_indices = @transform_9, window_bounds = array<i64: 128, 128>}, {pipeline_mode = #tpu.pipeline_mode<synchronous>, transform_indices = @transform_10, window_bounds = array<i64: 128, 128>}, {pipeline_mode = #tpu.pipeline_mode<synchronous>, transform_indices = @transform_11, window_bounds = array<i64: 1, 128>}, {transform_indices = @transform_12, window_bounds = array<i64: 4, 16, 128>}]} {
    %c0 = arith.constant 0 : index
    %c0_0 = arith.constant 0 : index
    %c0_1 = arith.constant 0 : index
    %0 = vector.load %arg1[%c0, %c0_0, %c0_1] : memref<4x8x256xf32, #tpu.memory_space<vmem>>, vector<4x8x256xf32>
    %c0_2 = arith.constant 0 : index
    %c0_3 = arith.constant 0 : index
    %c0_4 = arith.constant 0 : index
    %1 = vector.load %arg2[%c0_2, %c0_3, %c0_4] : memref<4x16x128xf32, #tpu.memory_space<vmem>>, vector<4x16x128xf32>
    %c0_5 = arith.constant 0 : index
    %c0_6 = arith.constant 0 : index
    %c0_7 = arith.constant 0 : index
    %2 = vector.load %arg3[%c0_5, %c0_6, %c0_7] : memref<4x1x8xf32, #tpu.memory_space<vmem>>, vector<4x1x8xf32>
    %3 = vector.shape_cast %2 : vector<4x1x8xf32> to vector<4x8xf32>
    %c0_8 = arith.constant 0 : index
    %c0_9 = arith.constant 0 : index
    %4 = vector.load %arg4[%c0_8, %c0_9] : memref<256x128xf32, #tpu.memory_space<vmem>>, vector<256x128xf32>
    %c0_10 = arith.constant 0 : index
    %c0_11 = arith.constant 0 : index
    %5 = vector.load %arg5[%c0_10, %c0_11] : memref<1x128xf32, #tpu.memory_space<vmem>>, vector<1x128xf32>
    %c0_12 = arith.constant 0 : index
    %c0_13 = arith.constant 0 : index
    %6 = vector.load %arg6[%c0_12, %c0_13] : memref<128x128xf32, #tpu.memory_space<vmem>>, vector<128x128xf32>
    %c0_14 = arith.constant 0 : index
    %c0_15 = arith.constant 0 : index
    %7 = vector.load %arg7[%c0_14, %c0_15] : memref<1x128xf32, #tpu.memory_space<vmem>>, vector<1x128xf32>
    %c0_16 = arith.constant 0 : index
    %c0_17 = arith.constant 0 : index
    %8 = vector.load %arg8[%c0_16, %c0_17] : memref<256x128xf32, #tpu.memory_space<vmem>>, vector<256x128xf32>
    %c0_18 = arith.constant 0 : index
    %c0_19 = arith.constant 0 : index
    %9 = vector.load %arg9[%c0_18, %c0_19] : memref<1x128xf32, #tpu.memory_space<vmem>>, vector<1x128xf32>
    %c0_20 = arith.constant 0 : index
    %c0_21 = arith.constant 0 : index
    %10 = vector.load %arg10[%c0_20, %c0_21] : memref<128x128xf32, #tpu.memory_space<vmem>>, vector<128x128xf32>
    %c0_22 = arith.constant 0 : index
    %c0_23 = arith.constant 0 : index
    %11 = vector.load %arg11[%c0_22, %c0_23] : memref<128x128xf32, #tpu.memory_space<vmem>>, vector<128x128xf32>
    %c0_24 = arith.constant 0 : index
    %c0_25 = arith.constant 0 : index
    %12 = vector.load %arg12[%c0_24, %c0_25] : memref<1x128xf32, #tpu.memory_space<vmem>>, vector<1x128xf32>
    %cst = arith.constant dense<0.000000e+00> : vector<4x128xf32>
    %13 = vector.multi_reduction <add>, %1, %cst [1] : vector<4x16x128xf32> to vector<4x128xf32>
    %cst_26 = arith.constant dense<0.000000e+00> : vector<4x128xf32>
    %14 = tpu.matmul %13, %6, %cst_26 {dimension_numbers = #tpu.dot_dimension_numbers<[1], [0], [0], [1], [0, 0, 1, 1], [], []>} : vector<4x128xf32>, vector<128x128xf32>, vector<4x128xf32> -> vector<4x128xf32>
    %cst_27 = arith.constant 1.600000e+01 : f32
    %15 = vector.broadcast %cst_27 : f32 to vector<1x128xf32>
    %16 = arith.mulf %15, %7 : vector<1x128xf32>
    %17 = vector.broadcast %16 : vector<1x128xf32> to vector<4x128xf32>
    %18 = arith.addf %14, %17 : vector<4x128xf32>
    %19 = vector.shape_cast %0 : vector<4x8x256xf32> to vector<32x256xf32>
    %cst_28 = arith.constant dense<0.000000e+00> : vector<32x128xf32>
    %20 = tpu.matmul %19, %4, %cst_28 {dimension_numbers = #tpu.dot_dimension_numbers<[1], [0], [0], [1], [0, 0, 1, 1], [], []>} : vector<32x256xf32>, vector<256x128xf32>, vector<32x128xf32> -> vector<32x128xf32>
    %21 = vector.broadcast %5 : vector<1x128xf32> to vector<32x128xf32>
    %22 = arith.addf %20, %21 : vector<32x128xf32>
    %23 = vector.shape_cast %22 : vector<32x128xf32> to vector<4x8x128xf32>
    %24 = vector.shape_cast %18 : vector<4x128xf32> to vector<4x1x128xf32>
    %25 = vector.broadcast %24 : vector<4x1x128xf32> to vector<4x8x128xf32>
    %26 = arith.mulf %23, %25 : vector<4x8x128xf32>
    %cst_29 = arith.constant dense<0.000000e+00> : vector<4x8xf32>
    %27 = vector.multi_reduction <add>, %26, %cst_29 [2] : vector<4x8x128xf32> to vector<4x8xf32>
    %28 = arith.mulf %27, %3 : vector<4x8xf32>
    %29 = arith.mulf %28, %28 : vector<4x8xf32>
    %cst_30 = arith.constant dense<0.000000e+00> : vector<4xf32>
    %30 = vector.multi_reduction <add>, %29, %cst_30 [1] : vector<4x8xf32> to vector<4xf32>
    %31 = vector.shape_cast %30 : vector<4xf32> to vector<4x1xf32>
    %32 = math.sqrt %31 : vector<4x1xf32>
    %33 = tpu.reciprocal %32 {approx = true} : vector<4x1xf32> -> vector<4x1xf32>
    %34 = vector.broadcast %33 : vector<4x1xf32> to vector<4x8xf32>
    %35 = arith.mulf %28, %34 : vector<4x8xf32>
    %36 = math.exp %35 : vector<4x8xf32>
    %cst_31 = arith.constant dense<0.000000e+00> : vector<4xf32>
    %37 = vector.multi_reduction <add>, %36, %cst_31 [1] : vector<4x8xf32> to vector<4xf32>
    %38 = vector.shape_cast %37 : vector<4xf32> to vector<4x1xf32>
    %cst_32 = arith.constant 1.000000e+00 : f32
    %39 = vector.broadcast %cst_32 : f32 to vector<4x1xf32>
    %40 = arith.subf %38, %39 : vector<4x1xf32>
    %41 = tpu.reciprocal %40 {approx = true} : vector<4x1xf32> -> vector<4x1xf32>
    %42 = vector.broadcast %41 : vector<4x1xf32> to vector<4x8xf32>
    %43 = arith.mulf %36, %42 : vector<4x8xf32>
    %44 = arith.mulf %43, %3 : vector<4x8xf32>
    %45 = vector.shape_cast %44 : vector<4x8xf32> to vector<4x8x1xf32>
    %46 = vector.broadcast %45 : vector<4x8x1xf32> to vector<4x8x256xf32>
    %47 = arith.mulf %46, %0 : vector<4x8x256xf32>
    %cst_33 = arith.constant dense<0.000000e+00> : vector<4x256xf32>
    %48 = vector.multi_reduction <add>, %47, %cst_33 [1] : vector<4x8x256xf32> to vector<4x256xf32>
    %cst_34 = arith.constant dense<0.000000e+00> : vector<4x128xf32>
    %49 = tpu.matmul %48, %8, %cst_34 {dimension_numbers = #tpu.dot_dimension_numbers<[1], [0], [0], [1], [0, 0, 1, 1], [], []>} : vector<4x256xf32>, vector<256x128xf32>, vector<4x128xf32> -> vector<4x128xf32>
    %50 = vector.broadcast %9 : vector<1x128xf32> to vector<4x128xf32>
    %51 = arith.addf %49, %50 : vector<4x128xf32>
    %52 = vector.extract_strided_slice %23 {offsets = [0, 0, 0], sizes = [4, 1, 128], strides = [1, 1, 1]} : vector<4x8x128xf32> to vector<4x1x128xf32>
    %53 = vector.shape_cast %52 : vector<4x1x128xf32> to vector<4x128xf32>
    %cst_35 = arith.constant dense<0.000000e+00> : vector<4x128xf32>
    %54 = tpu.matmul %51, %10, %cst_35 {dimension_numbers = #tpu.dot_dimension_numbers<[1], [0], [0], [1], [0, 0, 1, 1], [], []>} : vector<4x128xf32>, vector<128x128xf32>, vector<4x128xf32> -> vector<4x128xf32>
    %cst_36 = arith.constant dense<0.000000e+00> : vector<4x128xf32>
    %55 = tpu.matmul %53, %11, %cst_36 {dimension_numbers = #tpu.dot_dimension_numbers<[1], [0], [0], [1], [0, 0, 1, 1], [], []>} : vector<4x128xf32>, vector<128x128xf32>, vector<4x128xf32> -> vector<4x128xf32>
    %56 = arith.addf %54, %55 : vector<4x128xf32>
    %57 = vector.broadcast %12 : vector<1x128xf32> to vector<4x128xf32>
    %58 = arith.addf %56, %57 : vector<4x128xf32>
    %59 = arith.negf %58 : vector<4x128xf32>
    %60 = math.exp %59 : vector<4x128xf32>
    %cst_37 = arith.constant 1.000000e+00 : f32
    %61 = vector.broadcast %cst_37 : f32 to vector<4x128xf32>
    %62 = arith.addf %61, %60 : vector<4x128xf32>
    %63 = arith.divf %61, %62 : vector<4x128xf32>
    %64 = vector.shape_cast %63 : vector<4x128xf32> to vector<4x1x128xf32>
    %cst_38 = arith.constant 1.000000e+00 : f32
    %65 = vector.broadcast %cst_38 : f32 to vector<4x1x128xf32>
    %66 = arith.addf %65, %64 : vector<4x1x128xf32>
    %67 = vector.broadcast %66 : vector<4x1x128xf32> to vector<4x16x128xf32>
    %68 = arith.mulf %1, %67 : vector<4x16x128xf32>
    %c0_39 = arith.constant 0 : index
    %c0_40 = arith.constant 0 : index
    %c0_41 = arith.constant 0 : index
    %69 = vector.load %arg13[%c0_39, %c0_40, %c0_41] : memref<4x16x128xf32, #tpu.memory_space<vmem>>, vector<4x16x128xf32>
    tpu.vector_store %arg13[%c0_39, %c0_40, %c0_41], %68 {strides = array<i32>} : memref<4x16x128xf32, #tpu.memory_space<vmem>>, vector<4x16x128xf32>,
    return
  }
  func.func @transform_0(%arg0: i32) -> (i32, i32, i32) {
    %c0_i32 = arith.constant 0 : i32
    %c0_i32_0 = arith.constant 0 : i32
    %c0_i32_1 = arith.constant 0 : i32
    return %arg0, %c0_i32, %c0_i32_0 : i32, i32, i32
  }
  func.func @transform_1(%arg0: i32) -> (i32, i32, i32) {
    %c0_i32 = arith.constant 0 : i32
    %c0_i32_0 = arith.constant 0 : i32
    %c0_i32_1 = arith.constant 0 : i32
    return %arg0, %c0_i32, %c0_i32_0 : i32, i32, i32
  }
  func.func @transform_2(%arg0: i32) -> (i32, i32, i32) {
    %c0_i32 = arith.constant 0 : i32
    %c0_i32_0 = arith.constant 0 : i32
    %c0_i32_1 = arith.constant 0 : i32
    return %arg0, %c0_i32, %c0_i32_0 : i32, i32, i32
  }
  func.func @transform_3(%arg0: i32) -> (i32, i32) {
    %c0_i32 = arith.constant 0 : i32
    %c0_i32_0 = arith.constant 0 : i32
    %c0_i32_1 = arith.constant 0 : i32
    return %c0_i32, %c0_i32_0 : i32, i32
  }
  func.func @transform_4(%arg0: i32) -> (i32, i32) {
    %c0_i32 = arith.constant 0 : i32
    %c0_i32_0 = arith.constant 0 : i32
    %c0_i32_1 = arith.constant 0 : i32
    return %c0_i32, %c0_i32_0 : i32, i32
  }
  func.func @transform_5(%arg0: i32) -> (i32, i32) {
    %c0_i32 = arith.constant 0 : i32
    %c0_i32_0 = arith.constant 0 : i32
    %c0_i32_1 = arith.constant 0 : i32
    return %c0_i32, %c0_i32_0 : i32, i32
  }
  func.func @transform_6(%arg0: i32) -> (i32, i32) {
    %c0_i32 = arith.constant 0 : i32
    %c0_i32_0 = arith.constant 0 : i32
    %c0_i32_1 = arith.constant 0 : i32
    return %c0_i32, %c0_i32_0 : i32, i32
  }
  func.func @transform_7(%arg0: i32) -> (i32, i32) {
    %c0_i32 = arith.constant 0 : i32
    %c0_i32_0 = arith.constant 0 : i32
    %c0_i32_1 = arith.constant 0 : i32
    return %c0_i32, %c0_i32_0 : i32, i32
  }
  func.func @transform_8(%arg0: i32) -> (i32, i32) {
    %c0_i32 = arith.constant 0 : i32
    %c0_i32_0 = arith.constant 0 : i32
    %c0_i32_1 = arith.constant 0 : i32
    return %c0_i32, %c0_i32_0 : i32, i32
  }
  func.func @transform_9(%arg0: i32) -> (i32, i32) {
    %c0_i32 = arith.constant 0 : i32
    %c0_i32_0 = arith.constant 0 : i32
    %c0_i32_1 = arith.constant 0 : i32
    return %c0_i32, %c0_i32_0 : i32, i32
  }
  func.func @transform_10(%arg0: i32) -> (i32, i32) {
    %c0_i32 = arith.constant 0 : i32
    %c0_i32_0 = arith.constant 0 : i32
    %c0_i32_1 = arith.constant 0 : i32
    return %c0_i32, %c0_i32_0 : i32, i32
  }
  func.func @transform_11(%arg0: i32) -> (i32, i32) {
    %c0_i32 = arith.constant 0 : i32
    %c0_i32_0 = arith.constant 0 : i32
    %c0_i32_1 = arith.constant 0 : i32
    return %c0_i32, %c0_i32_0 : i32, i32
  }
  func.func @transform_12(%arg0: i32) -> (i32, i32, i32) {
    %c0_i32 = arith.constant 0 : i32
    %c0_i32_0 = arith.constant 0 : i32
    %c0_i32_1 = arith.constant 0 : i32
    return %arg0, %c0_i32, %c0_i32_0 : i32, i32, i32
  }
}

</mosaic_0001>

<llo_original>
// kernel: tpu_custom_call.1
$region0: #{tpu_custom_call.1}
  #allocation0 [shape = 'u32[]', space=smem, size = 0x4, offset = 0x4, fixed_abs, tag = 'smem constant byte address 0x4 - core index']
  #allocation1 [shape = 'u32[144,128]{1,0:T(1,128)}', space=vmem, size = 0x12000, scoped, tag = 'internal scratch']
  %s0 = inlined_call_operand.hbm [shape: f32[8,8,256], index: 0, kind: input, shape index: {}]
  %s1 = inlined_call_operand.hbm [shape: f32[8,16,128], index: 1, kind: input, shape index: {}]
  %s2 = inlined_call_operand.hbm [shape: f32[8,1,8], index: 2, kind: input, shape index: {}]
  %s3 = inlined_call_operand.hbm [shape: f32[256,128], index: 3, kind: input, shape index: {}]
  %s4 = inlined_call_operand.vmem [shape: f32[1,128], index: 4, kind: input, shape index: {}]
  %s5 = inlined_call_operand.hbm [shape: f32[128,128], index: 5, kind: input, shape index: {}]
  %s6 = inlined_call_operand.vmem [shape: f32[1,128], index: 6, kind: input, shape index: {}]
  %s7 = inlined_call_operand.hbm [shape: f32[256,128], index: 7, kind: input, shape index: {}]
  %s8 = inlined_call_operand.vmem [shape: f32[1,128], index: 8, kind: input, shape index: {}]
  %s9 = inlined_call_operand.hbm [shape: f32[128,128], index: 9, kind: input, shape index: {}]
  %s10 = inlined_call_operand.hbm [shape: f32[128,128], index: 10, kind: input, shape index: {}]
  %s11 = inlined_call_operand.vmem [shape: f32[1,128], index: 11, kind: input, shape index: {}]
  %s12 = inlined_call_operand.hbm [shape: f32[8,16,128], index: 12, kind: output, shape index: {}]
  %s13 = sld [smem:[#allocation0]]
  $region113: #{tpu_custom_call.1} parent=0
    _
  %s15 = ssub.s32 1, %s13
  %s16 = scalar_select 0, %s15, %s13
  $region1: #{tpu_custom_call.1} parent=0
    #allocation2 [shape = 'u8[65536]{0}', space=vmem, size = 0x10000, scoped, tag = 'input window, operand 0']
    #allocation3 [shape = 's32[2]{0}', space=sflag, size = 0x8, scoped, tag = 'scoped memory for tpu_custom_call.1']
    #allocation4 [shape = 's32[2]{0}', space=sflag, size = 0x8, scoped, tag = 'scoped memory for tpu_custom_call.1']
    #allocation5 [shape = 'u8[65536]{0}', space=vmem, size = 0x10000, scoped, tag = 'input window, operand 1']
    #allocation6 [shape = 's32[2]{0}', space=sflag, size = 0x8, scoped, tag = 'scoped memory for tpu_custom_call.1']
    #allocation7 [shape = 'u8[4096]{0}', space=vmem, size = 0x1000, scoped, tag = 'input window, operand 2']
    #allocation8 [shape = 'u8[131072]{0}', space=vmem, size = 0x20000, scoped, tag = 'input window, operand 3, single buffered']
    #allocation9 [shape = 's32[1]{0}', space=sflag, size = 0x4, scoped, tag = 'scoped memory for tpu_custom_call.1']
    #allocation10 [shape = 'u8[65536]{0}', space=vmem, size = 0x10000, scoped, tag = 'input window, operand 5, single buffered']
    #allocation11 [shape = 'u8[131072]{0}', space=vmem, size = 0x20000, scoped, tag = 'input window, operand 7, single buffered']
    #allocation12 [shape = 's32[1]{0}', space=sflag, size = 0x4, scoped, tag = 'scoped memory for tpu_custom_call.1']
    #allocation13 [shape = 'u8[65536]{0}', space=vmem, size = 0x10000, scoped, tag = 'input window, operand 9, single buffered']
    #allocation14 [shape = 'u8[65536]{0}', space=vmem, size = 0x10000, scoped, tag = 'input window, operand 10, single buffered']
    #allocation15 [shape = 's32[1]{0}', space=sflag, size = 0x4, scoped, tag = 'scoped memory for tpu_custom_call.1']
    #allocation16 [shape = 'u8[65536]{0}', space=vmem, size = 0x10000, scoped, tag = 'output window, operand 0']
    %17 = vsyncpa [#allocation3], 0
    %s18 = scalar_lea.sflag [#allocation3], 1
    %19 = vsyncpa %s18, 0
    %20 = vsyncpa [#allocation6], 0
    %s21 = scalar_lea.sflag [#allocation6], 1
    %22 = vsyncpa %s21, 0
    %23 = vsyncpa [#allocation9], 0
    %24 = vsyncpa [#allocation12], 0
    %25 = vsyncpa [#allocation15], 0
    %26 = vsyncpa [#allocation4], 0
    %s27 = scalar_lea.sflag [#allocation4], 1
    %28 = vsyncpa %s27, 0
    loop: start=0, step=1, limit=4
    $region2: #{tpu_custom_call.1} parent=1 // loop_pre_header
      _
    $region3: #{tpu_custom_call.1} parent=1 // loop_header
      %s30 = sphi 0, %s34
      %p31 = scmp.ge.s32.totalorder %s30, 4
      %s40 = sphi 0, %s42
      %s43 = sphi 0, %s40
      %s44 = sphi 0, %s43
      %s60 = sphi 0, %s44
      %s66 = sphi 0, %s68
      %s69 = sphi 0, %s66
      %s70 = sphi 0, %s69
      %s86 = sphi 0, %s70
      %s92 = sphi 0, %s94
      %s95 = sphi 0, %s92
      %s96 = sphi 0, %s95
      %s112 = sphi 0, %s96
      %s116 = sphi 0, %s116
      %s118 = sphi 0, %s116
      %s119 = sphi 0, %s118
      %s133 = sphi 0, %s119
      %s137 = sphi 0, %s137
      %s139 = sphi 0, %s137
      %s140 = sphi 0, %s139
      %s154 = sphi 0, %s140
      %s158 = sphi 0, %s158
      %s160 = sphi 0, %s158
      %s161 = sphi 0, %s160
      %s175 = sphi 0, %s161
      %s179 = sphi 0, %s179
      %s181 = sphi 0, %s179
      %s182 = sphi 0, %s181
      %s196 = sphi 0, %s182
      %s200 = sphi 0, %s200
      %s202 = sphi 0, %s200
      %s203 = sphi 0, %s202
      %s217 = sphi 0, %s203
      %s221 = sphi 0, %s221
      %s223 = sphi 0, %s221
      %s224 = sphi 0, %s223
      %s238 = sphi 0, %s224
      %s242 = sphi 0, %s242
      %s244 = sphi 0, %s242
      %s245 = sphi 0, %s244
      %s259 = sphi 0, %s245
      %s263 = sphi 0, %s263
      %s265 = sphi 0, %s263
      %s266 = sphi 0, %s265
      %s280 = sphi 0, %s266
      %s284 = sphi 0, %s284
      %s286 = sphi 0, %s284
      %s287 = sphi 0, %s286
      %s301 = sphi 0, %s287
      %s307 = sphi 0, %s309
      %s310 = sphi 0, %s307
      %s311 = sphi 0, %s310
      %s327 = sphi 0, %s311
    $region4: #{tpu_custom_call.1} parent=1 // loop_header_branch
      %33 = sbr.rel (%p31) target = $region8
    $region5: #{tpu_custom_call.1} parent=1 // loop_body
      %s35 = ssub.s32 %s30, 1
      %s36 = ssub.s32 %s30, 2
      %s37 = sadd.s32 %s30, 1
      %s38 = ssub.s32 %s30, %s37
      %p39 = scmp.eq.s32.totalorder %s38, 0
      %s41 = sadd.s32 %s40, 1
      %s42 = scalar_select %p39, %s40, %s41
      %p45 = pneg %p39
      %p46 = scmp.eq.s32.totalorder %s30, 1
      %p47 = por %p45, %p46
      %p48 = scmp.ne.s32.totalorder %s40, %s43
      %p49 = scmp.eq.s32.totalorder %s30, 0
      %p50 = por %p48, %p49
      %p51 = scmp.ne.s32.totalorder %s40, %s43
      %p52 = scmp.eq.s32.totalorder %s35, 1
      %p53 = por %p51, %p52
      %p54 = scmp.ne.s32.totalorder %s43, %s44
      %p55 = scmp.eq.s32.totalorder %s35, 0
      %p56 = por %p54, %p55
      %p57 = scmp.ne.s32.totalorder %s43, %s44
      %p58 = scmp.eq.s32.totalorder %s36, 1
      %p59 = por %p57, %p58
      %p61 = scmp.ne.s32.totalorder %s44, %s60
      %p62 = scmp.eq.s32.totalorder %s36, 0
      %p63 = por %p61, %p62
      %s64 = ssub.s32 %s30, %s37
      %p65 = scmp.eq.s32.totalorder %s64, 0
      %s67 = sadd.s32 %s66, 1
      %s68 = scalar_select %p65, %s66, %s67
      %p71 = pneg %p65
      %p72 = scmp.eq.s32.totalorder %s30, 1
      %p73 = por %p71, %p72
      %p74 = scmp.ne.s32.totalorder %s66, %s69
      %p75 = scmp.eq.s32.totalorder %s30, 0
      %p76 = por %p74, %p75
      %p77 = scmp.ne.s32.totalorder %s66, %s69
      %p78 = scmp.eq.s32.totalorder %s35, 1
      %p79 = por %p77, %p78
      %p80 = scmp.ne.s32.totalorder %s69, %s70
      %p81 = scmp.eq.s32.totalorder %s35, 0
      %p82 = por %p80, %p81
      %p83 = scmp.ne.s32.totalorder %s69, %s70
      %p84 = scmp.eq.s32.totalorder %s36, 1
      %p85 = por %p83, %p84
      %p87 = scmp.ne.s32.totalorder %s70, %s86
      %p88 = scmp.eq.s32.totalorder %s36, 0
      %p89 = por %p87, %p88
      %s90 = ssub.s32 %s30, %s37
      %p91 = scmp.eq.s32.totalorder %s90, 0
      %s93 = sadd.s32 %s92, 1
      %s94 = scalar_select %p91, %s92, %s93
      %p97 = pneg %p91
      %p98 = scmp.eq.s32.totalorder %s30, 1
      %p99 = por %p97, %p98
      %p100 = scmp.ne.s32.totalorder %s92, %s95
      %p101 = scmp.eq.s32.totalorder %s30, 0
      %p102 = por %p100, %p101
      %p103 = scmp.ne.s32.totalorder %s92, %s95
      %p104 = scmp.eq.s32.totalorder %s35, 1
      %p105 = por %p103, %p104
      %p106 = scmp.ne.s32.totalorder %s95, %s96
      %p107 = scmp.eq.s32.totalorder %s35, 0
      %p108 = por %p106, %p107
      %p109 = scmp.ne.s32.totalorder %s95, %s96
      %p110 = scmp.eq.s32.totalorder %s36, 1
      %p111 = por %p109, %p110
      %p113 = scmp.ne.s32.totalorder %s96, %s112
      %p114 = scmp.eq.s32.totalorder %s36, 0
      %p115 = por %p113, %p114
      %s117 = sadd.s32 %s116, 1
      %p120 = scmp.eq.s32.totalorder %s30, 1
      %p121 = scmp.ne.s32.totalorder %s116, %s118
      %p122 = scmp.eq.s32.totalorder %s30, 0
      %p123 = por %p121, %p122
      %p124 = scmp.ne.s32.totalorder %s116, %s118
      %p125 = scmp.eq.s32.totalorder %s35, 1
      %p126 = por %p124, %p125
      %p127 = scmp.ne.s32.totalorder %s118, %s119
      %p128 = scmp.eq.s32.totalorder %s35, 0
      %p129 = por %p127, %p128
      %p130 = scmp.ne.s32.totalorder %s118, %s119
      %p131 = scmp.eq.s32.totalorder %s36, 1
      %p132 = por %p130, %p131
      %p134 = scmp.ne.s32.totalorder %s119, %s133
      %p135 = scmp.eq.s32.totalorder %s36, 0
      %p136 = por %p134, %p135
      %s138 = sadd.s32 %s137, 1
      %p141 = scmp.eq.s32.totalorder %s30, 1
      %p142 = scmp.ne.s32.totalorder %s137, %s139
      %p143 = scmp.eq.s32.totalorder %s30, 0
      %p144 = por %p142, %p143
      %p145 = scmp.ne.s32.totalorder %s137, %s139
      %p146 = scmp.eq.s32.totalorder %s35, 1
      %p147 = por %p145, %p146
      %p148 = scmp.ne.s32.totalorder %s139, %s140
      %p149 = scmp.eq.s32.totalorder %s35, 0
      %p150 = por %p148, %p149
      %p151 = scmp.ne.s32.totalorder %s139, %s140
      %p152 = scmp.eq.s32.totalorder %s36, 1
      %p153 = por %p151, %p152
      %p155 = scmp.ne.s32.totalorder %s140, %s154
      %p156 = scmp.eq.s32.totalorder %s36, 0
      %p157 = por %p155, %p156
      %s159 = sadd.s32 %s158, 1
      %p162 = scmp.eq.s32.totalorder %s30, 1
      %p163 = scmp.ne.s32.totalorder %s158, %s160
      %p164 = scmp.eq.s32.totalorder %s30, 0
      %p165 = por %p163, %p164
      %p166 = scmp.ne.s32.totalorder %s158, %s160
      %p167 = scmp.eq.s32.totalorder %s35, 1
      %p168 = por %p166, %p167
      %p169 = scmp.ne.s32.totalorder %s160, %s161
      %p170 = scmp.eq.s32.totalorder %s35, 0
      %p171 = por %p169, %p170
      %p172 = scmp.ne.s32.totalorder %s160, %s161
      %p173 = scmp.eq.s32.totalorder %s36, 1
      %p174 = por %p172, %p173
      %p176 = scmp.ne.s32.totalorder %s161, %s175
      %p177 = scmp.eq.s32.totalorder %s36, 0
      %p178 = por %p176, %p177
      %s180 = sadd.s32 %s179, 1
      %p183 = scmp.eq.s32.totalorder %s30, 1
      %p184 = scmp.ne.s32.totalorder %s179, %s181
      %p185 = scmp.eq.s32.totalorder %s30, 0
      %p186 = por %p184, %p185
      %p187 = scmp.ne.s32.totalorder %s179, %s181
      %p188 = scmp.eq.s32.totalorder %s35, 1
      %p189 = por %p187, %p188
      %p190 = scmp.ne.s32.totalorder %s181, %s182
      %p191 = scmp.eq.s32.totalorder %s35, 0
      %p192 = por %p190, %p191
      %p193 = scmp.ne.s32.totalorder %s181, %s182
      %p194 = scmp.eq.s32.totalorder %s36, 1
      %p195 = por %p193, %p194
      %p197 = scmp.ne.s32.totalorder %s182, %s196
      %p198 = scmp.eq.s32.totalorder %s36, 0
      %p199 = por %p197, %p198
      %s201 = sadd.s32 %s200, 1
      %p204 = scmp.eq.s32.totalorder %s30, 1
      %p205 = scmp.ne.s32.totalorder %s200, %s202
      %p206 = scmp.eq.s32.totalorder %s30, 0
      %p207 = por %p205, %p206
      %p208 = scmp.ne.s32.totalorder %s200, %s202
      %p209 = scmp.eq.s32.totalorder %s35, 1
      %p210 = por %p208, %p209
      %p211 = scmp.ne.s32.totalorder %s202, %s203
      %p212 = scmp.eq.s32.totalorder %s35, 0
      %p213 = por %p211, %p212
      %p214 = scmp.ne.s32.totalorder %s202, %s203
      %p215 = scmp.eq.s32.totalorder %s36, 1
      %p216 = por %p214, %p215
      %p218 = scmp.ne.s32.totalorder %s203, %s217
      %p219 = scmp.eq.s32.totalorder %s36, 0
      %p220 = por %p218, %p219
      %s222 = sadd.s32 %s221, 1
      %p225 = scmp.eq.s32.totalorder %s30, 1
      %p226 = scmp.ne.s32.totalorder %s221, %s223
      %p227 = scmp.eq.s32.totalorder %s30, 0
      %p228 = por %p226, %p227
      %p229 = scmp.ne.s32.totalorder %s221, %s223
      %p230 = scmp.eq.s32.totalorder %s35, 1
      %p231 = por %p229, %p230
      %p232 = scmp.ne.s32.totalorder %s223, %s224
      %p233 = scmp.eq.s32.totalorder %s35, 0
      %p234 = por %p232, %p233
      %p235 = scmp.ne.s32.totalorder %s223, %s224
      %p236 = scmp.eq.s32.totalorder %s36, 1
      %p237 = por %p235, %p236
      %p239 = scmp.ne.s32.totalorder %s224, %s238
      %p240 = scmp.eq.s32.totalorder %s36, 0
      %p241 = por %p239, %p240
      %s243 = sadd.s32 %s242, 1
      %p246 = scmp.eq.s32.totalorder %s30, 1
      %p247 = scmp.ne.s32.totalorder %s242, %s244
      %p248 = scmp.eq.s32.totalorder %s30, 0
      %p249 = por %p247, %p248
      %p250 = scmp.ne.s32.totalorder %s242, %s244
      %p251 = scmp.eq.s32.totalorder %s35, 1
      %p252 = por %p250, %p251
      %p253 = scmp.ne.s32.totalorder %s244, %s245
      %p254 = scmp.eq.s32.totalorder %s35, 0
      %p255 = por %p253, %p254
      %p256 = scmp.ne.s32.totalorder %s244, %s245
      %p257 = scmp.eq.s32.totalorder %s36, 1
      %p258 = por %p256, %p257
      %p260 = scmp.ne.s32.totalorder %s245, %s259
      %p261 = scmp.eq.s32.totalorder %s36, 0
      %p262 = por %p260, %p261
      %s264 = sadd.s32 %s263, 1
      %p267 = scmp.eq.s32.totalorder %s30, 1
      %p268 = scmp.ne.s32.totalorder %s263, %s265
      %p269 = scmp.eq.s32.totalorder %s30, 0
      %p270 = por %p268, %p269
      %p271 = scmp.ne.s32.totalorder %s263, %s265
      %p272 = scmp.eq.s32.totalorder %s35, 1
      %p273 = por %p271, %p272
      %p274 = scmp.ne.s32.totalorder %s265, %s266
      %p275 = scmp.eq.s32.totalorder %s35, 0
      %p276 = por %p274, %p275
      %p277 = scmp.ne.s32.totalorder %s265, %s266
      %p278 = scmp.eq.s32.totalorder %s36, 1
      %p279 = por %p277, %p278
      %p281 = scmp.ne.s32.totalorder %s266, %s280
      %p282 = scmp.eq.s32.totalorder %s36, 0
      %p283 = por %p281, %p282
      %s285 = sadd.s32 %s284, 1
      %p288 = scmp.eq.s32.totalorder %s30, 1
      %p289 = scmp.ne.s32.totalorder %s284, %s286
      %p290 = scmp.eq.s32.totalorder %s30, 0
      %p291 = por %p289, %p290
      %p292 = scmp.ne.s32.totalorder %s284, %s286
      %p293 = scmp.eq.s32.totalorder %s35, 1
      %p294 = por %p292, %p293
      %p295 = scmp.ne.s32.totalorder %s286, %s287
      %p296 = scmp.eq.s32.totalorder %s35, 0
      %p297 = por %p295, %p296
      %p298 = scmp.ne.s32.totalorder %s286, %s287
      %p299 = scmp.eq.s32.totalorder %s36, 1
      %p300 = por %p298, %p299
      %p302 = scmp.ne.s32.totalorder %s287, %s301
      %p303 = scmp.eq.s32.totalorder %s36, 0
      %p304 = por %p302, %p303
      %s305 = ssub.s32 %s30, %s37
      %p306 = scmp.eq.s32.totalorder %s305, 0
      %s308 = sadd.s32 %s307, 1
      %s309 = scalar_select %p306, %s307, %s308
      %p312 = pneg %p306
      %p313 = scmp.eq.s32.totalorder %s30, 1
      %p314 = por %p312, %p313
      %p315 = scmp.ne.s32.totalorder %s307, %s310
      %p316 = scmp.eq.s32.totalorder %s30, 0
      %p317 = por %p315, %p316
      %p318 = scmp.ne.s32.totalorder %s307, %s310
      %p319 = scmp.eq.s32.totalorder %s35, 1
      %p320 = por %p318, %p319
      %p321 = scmp.ne.s32.totalorder %s310, %s311
      %p322 = scmp.eq.s32.totalorder %s35, 0
      %p323 = por %p321, %p322
      %p324 = scmp.ne.s32.totalorder %s310, %s311
      %p325 = scmp.eq.s32.totalorder %s36, 1
      %p326 = por %p324, %p325
      %p328 = scmp.ne.s32.totalorder %s311, %s327
      %p329 = scmp.eq.s32.totalorder %s36, 0
      %p330 = por %p328, %p329
      %p331 = scmp.le.s32.totalorder 1, %s30
      %p332 = scmp.lt.s32.totalorder %s30, 3
      %p333 = pnand %p331, %p332
      %p334 = pneg %p333
      // Predicated region
      $region9: #{tpu_custom_call.1} parent=5 // pred_check
        _
      $region10: #{tpu_custom_call.1} parent=5 // pred_check_branch
        %336 = sbr.rel (%p333) target = $region12
      $region11: #{tpu_custom_call.1} parent=5 // pred_region
        %s337 = ssub.s32 %s30, 1
        // Predicated region
        $region13: #{tpu_custom_call.1} parent=11 // pred_check
          %p338 = pneg %p129
        $region14: #{tpu_custom_call.1} parent=11 // pred_check_branch
          %340 = sbr.rel (%p338) target = $region16
        $region15: #{tpu_custom_call.1} parent=11 // pred_region
          %s342 = ssub.s32 4096, 4096
          %343 = vsyncadd [#allocation9], %s342
          %s344 = sshll.u32 [#allocation8], 4
          %s345 = int_to_ptr.vmem [resolvable:$true] %s344
          %350 = dma.hbm_to_vmem [thread:$0]  %s3, 4096, %s345, [#allocation9], 128, 128, 8
        $region16: #{tpu_custom_call.1} parent=11 // pred_fallthru
          _
        // Predicated region
        $region17: #{tpu_custom_call.1} parent=11 // pred_check
          %p351 = pneg %p150
        $region18: #{tpu_custom_call.1} parent=11 // pred_check_branch
          %353 = sbr.rel (%p351) target = $region20
        $region19: #{tpu_custom_call.1} parent=11 // pred_region
          _
        $region20: #{tpu_custom_call.1} parent=11 // pred_fallthru
          _
        // Predicated region
        $region21: #{tpu_custom_call.1} parent=11 // pred_check
          %p354 = pneg %p171
        $region22: #{tpu_custom_call.1} parent=11 // pred_check_branch
          %356 = sbr.rel (%p354) target = $region24
        $region23: #{tpu_custom_call.1} parent=11 // pred_region
          %s358 = ssub.s32 2048, 2048
          %359 = vsyncadd [#allocation9], %s358
          %s360 = sshll.u32 [#allocation10], 4
          %s361 = int_to_ptr.vmem [resolvable:$true] %s360
          %366 = dma.hbm_to_vmem [thread:$0]  %s5, 2048, %s361, [#allocation9], 128, 128, 8
        $region24: #{tpu_custom_call.1} parent=11 // pred_fallthru
          _
        // Predicated region
        $region25: #{tpu_custom_call.1} parent=11 // pred_check
          %p367 = pneg %p192
        $region26: #{tpu_custom_call.1} parent=11 // pred_check_branch
          %369 = sbr.rel (%p367) target = $region28
        $region27: #{tpu_custom_call.1} parent=11 // pred_region
          _
        $region28: #{tpu_custom_call.1} parent=11 // pred_fallthru
          _
        // Predicated region
        $region29: #{tpu_custom_call.1} parent=11 // pred_check
          %p370 = pneg %p213
        $region30: #{tpu_custom_call.1} parent=11 // pred_check_branch
          %372 = sbr.rel (%p370) target = $region32
        $region31: #{tpu_custom_call.1} parent=11 // pred_region
          %s374 = ssub.s32 4096, 4096
          %375 = vsyncadd [#allocation12], %s374
          %s376 = sshll.u32 [#allocation11], 4
          %s377 = int_to_ptr.vmem [resolvable:$true] %s376
          %382 = dma.hbm_to_vmem [thread:$0]  %s7, 4096, %s377, [#allocation12], 128, 128, 8
        $region32: #{tpu_custom_call.1} parent=11 // pred_fallthru
          _
        // Predicated region
        $region33: #{tpu_custom_call.1} parent=11 // pred_check
          %p383 = pneg %p234
        $region34: #{tpu_custom_call.1} parent=11 // pred_check_branch
          %385 = sbr.rel (%p383) target = $region36
        $region35: #{tpu_custom_call.1} parent=11 // pred_region
          _
        $region36: #{tpu_custom_call.1} parent=11 // pred_fallthru
          _
        // Predicated region
        $region37: #{tpu_custom_call.1} parent=11 // pred_check
          %p386 = pneg %p255
        $region38: #{tpu_custom_call.1} parent=11 // pred_check_branch
          %388 = sbr.rel (%p386) target = $region40
        $region39: #{tpu_custom_call.1} parent=11 // pred_region
          %s390 = ssub.s32 2048, 2048
          %391 = vsyncadd [#allocation12], %s390
          %s392 = sshll.u32 [#allocation13], 4
          %s393 = int_to_ptr.vmem [resolvable:$true] %s392
          %398 = dma.hbm_to_vmem [thread:$0]  %s9, 2048, %s393, [#allocation12], 128, 128, 8
        $region40: #{tpu_custom_call.1} parent=11 // pred_fallthru
          _
        // Predicated region
        $region41: #{tpu_custom_call.1} parent=11 // pred_check
          %p399 = pneg %p276
        $region42: #{tpu_custom_call.1} parent=11 // pred_check_branch
          %401 = sbr.rel (%p399) target = $region44
        $region43: #{tpu_custom_call.1} parent=11 // pred_region
          %s403 = ssub.s32 2048, 2048
          %404 = vsyncadd [#allocation15], %s403
          %s405 = sshll.u32 [#allocation14], 4
          %s406 = int_to_ptr.vmem [resolvable:$true] %s405
          %411 = dma.hbm_to_vmem [thread:$0]  %s10, 2048, %s406, [#allocation15], 128, 128, 8
        $region44: #{tpu_custom_call.1} parent=11 // pred_fallthru
          _
        // Predicated region
        $region45: #{tpu_custom_call.1} parent=11 // pred_check
          %p412 = pneg %p297
        $region46: #{tpu_custom_call.1} parent=11 // pred_check_branch
          %414 = sbr.rel (%p412) target = $region48
        $region47: #{tpu_custom_call.1} parent=11 // pred_region
          _
        $region48: #{tpu_custom_call.1} parent=11 // pred_fallthru
          _
      $region12: #{tpu_custom_call.1} parent=5 // pred_fallthru
        _
      %p415 = scmp.lt.s32.totalorder %s30, 2
      // Predicated region
      $region49: #{tpu_custom_call.1} parent=5 // pred_check
        %p416 = pneg %p415
      $region50: #{tpu_custom_call.1} parent=5 // pred_check_branch
        %418 = sbr.rel (%p416) target = $region52
      $region51: #{tpu_custom_call.1} parent=5 // pred_region
        // Predicated region
        $region53: #{tpu_custom_call.1} parent=51 // pred_check
          %p419 = pneg %p50
        $region54: #{tpu_custom_call.1} parent=51 // pred_check_branch
          %421 = sbr.rel (%p419) target = $region56
        $region55: #{tpu_custom_call.1} parent=51 // pred_region
          %s422 = sand.u32 %s40, 1
          %s423 = scalar_lea.sflag [#allocation3], %s422
          %s424 = sand.u32 %s40, 1
          %s425 = smul.addr %s424, 64
          %s426 = scalar_lea.vmem [#allocation2], %s425
          %s427 = smul.u32 4, %s30
          %s429 = ssub.s32 1024, 1024
          %430 = vsyncadd %s423, %s429
          %s431 = smul.addr %s427, 2
          %s432 = smul.addr %s431, 128
          %s433 = scalar_lea.hbm %s0, %s432
          %s434 = sshll.u32 %s426, 4
          %s435 = int_to_ptr.vmem [resolvable:$true] %s434
          %440 = dma.hbm_to_vmem [thread:$0]  %s433, 1024, %s435, %s423, 256, 256, 16
        $region56: #{tpu_custom_call.1} parent=51 // pred_fallthru
          _
        // Predicated region
        $region57: #{tpu_custom_call.1} parent=51 // pred_check
          %p441 = pneg %p76
        $region58: #{tpu_custom_call.1} parent=51 // pred_check_branch
          %443 = sbr.rel (%p441) target = $region60
        $region59: #{tpu_custom_call.1} parent=51 // pred_region
          %s444 = sand.u32 %s30, 1
          %s445 = scalar_lea.sflag [#allocation6], %s444
          %s446 = sand.u32 %s66, 1
          %s447 = smul.addr %s446, 64
          %s448 = scalar_lea.vmem [#allocation5], %s447
          %s449 = smul.u32 4, %s30
          %s451 = ssub.s32 1024, 1024
          %452 = vsyncadd %s445, %s451
          %s453 = smul.addr %s449, 2
          %s454 = smul.addr %s453, 128
          %s455 = scalar_lea.hbm %s1, %s454
          %s456 = sshll.u32 %s448, 4
          %s457 = int_to_ptr.vmem [resolvable:$true] %s456
          %462 = dma.hbm_to_vmem [thread:$0]  %s455, 1024, %s457, %s445, 128, 128, 8
        $region60: #{tpu_custom_call.1} parent=51 // pred_fallthru
          _
        // Predicated region
        $region61: #{tpu_custom_call.1} parent=51 // pred_check
          %p463 = pneg %p102
        $region62: #{tpu_custom_call.1} parent=51 // pred_check_branch
          %465 = sbr.rel (%p463) target = $region64
        $region63: #{tpu_custom_call.1} parent=51 // pred_region
          %s466 = sand.u32 %s30, 1
          %s467 = scalar_lea.sflag [#allocation6], %s466
          %s468 = sand.u32 %s92, 1
          %s469 = smul.addr %s468, 4
          %s470 = scalar_lea.vmem [#allocation7], %s469
          %s471 = smul.u32 4, %s30
          %s473 = ssub.s32 64, 64
          %474 = vsyncadd %s467, %s473
          %s475 = smul.addr %s471, 16
          %s476 = scalar_lea.hbm %s2, %s475
          %s477 = sshll.u32 %s470, 4
          %s478 = int_to_ptr.vmem [resolvable:$true] %s477
          %483 = dma.hbm_to_vmem [thread:$0]  %s476, 64, %s478, %s467, 16, 16, 1
        $region64: #{tpu_custom_call.1} parent=51 // pred_fallthru
          _
      $region52: #{tpu_custom_call.1} parent=5 // pred_fallthru
        _
      %p484 = scmp.le.s32.totalorder 1, %s30
      %p485 = scmp.lt.s32.totalorder %s30, 3
      %p486 = pnand %p484, %p485
      %p487 = pneg %p486
      // Predicated region
      $region65: #{tpu_custom_call.1} parent=5 // pred_check
        _
      $region66: #{tpu_custom_call.1} parent=5 // pred_check_branch
        %489 = sbr.rel (%p486) target = $region68
      $region67: #{tpu_custom_call.1} parent=5 // pred_region
        %s490 = ssub.s32 %s30, 1
        %s491 = sand.u32 %s43, 1
        %s492 = scalar_lea.sflag [#allocation3], %s491
        %s493 = sand.u32 %s43, 1
        %s494 = smul.addr %s493, 64
        %s495 = scalar_lea.vmem [#allocation2], %s494
        // Predicated region
        $region69: #{tpu_custom_call.1} parent=67 // pred_check
          %p496 = pneg %p56
        $region70: #{tpu_custom_call.1} parent=67 // pred_check_branch
          %498 = sbr.rel (%p496) target = $region72
        $region71: #{tpu_custom_call.1} parent=67 // pred_region
          %499 = dma.done %s492, 1024
        $region72: #{tpu_custom_call.1} parent=67 // pred_fallthru
          _
        %s500 = sand.u32 %s35, 1
        %s501 = scalar_lea.sflag [#allocation6], %s500
        %s502 = sand.u32 %s69, 1
        %s503 = smul.addr %s502, 64
        %s504 = scalar_lea.vmem [#allocation5], %s503
        // Predicated region
        $region73: #{tpu_custom_call.1} parent=67 // pred_check
          %p505 = pneg %p82
        $region74: #{tpu_custom_call.1} parent=67 // pred_check_branch
          %507 = sbr.rel (%p505) target = $region76
        $region75: #{tpu_custom_call.1} parent=67 // pred_region
          %508 = dma.done %s501, 1024
        $region76: #{tpu_custom_call.1} parent=67 // pred_fallthru
          _
        %s509 = sand.u32 %s35, 1
        %s510 = scalar_lea.sflag [#allocation6], %s509
        %s511 = sand.u32 %s95, 1
        %s512 = smul.addr %s511, 4
        %s513 = scalar_lea.vmem [#allocation7], %s512
        // Predicated region
        $region77: #{tpu_custom_call.1} parent=67 // pred_check
          %p514 = pneg %p108
        $region78: #{tpu_custom_call.1} parent=67 // pred_check_branch
          %516 = sbr.rel (%p514) target = $region80
        $region79: #{tpu_custom_call.1} parent=67 // pred_region
          %517 = dma.done %s510, 64
        $region80: #{tpu_custom_call.1} parent=67 // pred_fallthru
          _
        // Predicated region
        $region81: #{tpu_custom_call.1} parent=67 // pred_check
          %p518 = pneg %p129
        $region82: #{tpu_custom_call.1} parent=67 // pred_check_branch
          %520 = sbr.rel (%p518) target = $region84
        $region83: #{tpu_custom_call.1} parent=67 // pred_region
          %521 = dma.done [#allocation9], 4096
        $region84: #{tpu_custom_call.1} parent=67 // pred_fallthru
          _
        // Predicated region
        $region85: #{tpu_custom_call.1} parent=67 // pred_check
          %p522 = pneg %p171
        $region86: #{tpu_custom_call.1} parent=67 // pred_check_branch
          %524 = sbr.rel (%p522) target = $region88
        $region87: #{tpu_custom_call.1} parent=67 // pred_region
          %525 = dma.done [#allocation9], 2048
        $region88: #{tpu_custom_call.1} parent=67 // pred_fallthru
          _
        // Predicated region
        $region89: #{tpu_custom_call.1} parent=67 // pred_check
          %p526 = pneg %p213
        $region90: #{tpu_custom_call.1} parent=67 // pred_check_branch
          %528 = sbr.rel (%p526) target = $region92
        $region91: #{tpu_custom_call.1} parent=67 // pred_region
          %529 = dma.done [#allocation12], 4096
        $region92: #{tpu_custom_call.1} parent=67 // pred_fallthru
          _
        // Predicated region
        $region93: #{tpu_custom_call.1} parent=67 // pred_check
          %p530 = pneg %p255
        $region94: #{tpu_custom_call.1} parent=67 // pred_check_branch
          %532 = sbr.rel (%p530) target = $region96
        $region95: #{tpu_custom_call.1} parent=67 // pred_region
          %533 = dma.done [#allocation12], 2048
        $region96: #{tpu_custom_call.1} parent=67 // pred_fallthru
          _
        // Predicated region
        $region97: #{tpu_custom_call.1} parent=67 // pred_check
          %p534 = pneg %p276
        $region98: #{tpu_custom_call.1} parent=67 // pred_check_branch
          %536 = sbr.rel (%p534) target = $region100
        $region99: #{tpu_custom_call.1} parent=67 // pred_region
          %537 = dma.done [#allocation15], 2048
        $region100: #{tpu_custom_call.1} parent=67 // pred_fallthru
          _
        %s538 = sand.u32 %s43, 1
        %s539 = scalar_lea.sflag [#allocation3], %s538
        %s540 = sand.u32 %s43, 1
        %s541 = smul.addr %s540, 64
        %s542 = scalar_lea.vmem [#allocation2], %s541
        %p543 = pneg %p56
        %p544 = pneg %p53
        %s545 = sand.u32 %s35, 1
        %s546 = scalar_lea.sflag [#allocation6], %s545
        %s547 = sand.u32 %s69, 1
        %s548 = smul.addr %s547, 64
        %s549 = scalar_lea.vmem [#allocation5], %s548
        %p550 = pneg %p82
        %p551 = pneg %p79
        %s552 = sand.u32 %s35, 1
        %s553 = scalar_lea.sflag [#allocation6], %s552
        %s554 = sand.u32 %s95, 1
        %s555 = smul.addr %s554, 4
        %s556 = scalar_lea.vmem [#allocation7], %s555
        %p557 = pneg %p108
        %p558 = pneg %p105
        %p559 = pneg %p129
        %p560 = pneg %p126
        %p561 = pneg %p150
        %p562 = pneg %p147
        %p563 = pneg %p171
        %p564 = pneg %p168
        %p565 = pneg %p192
        %p566 = pneg %p189
        %p567 = pneg %p213
        %p568 = pneg %p210
        %p569 = pneg %p234
        %p570 = pneg %p231
        %p571 = pneg %p255
        %p572 = pneg %p252
        %p573 = pneg %p276
        %p574 = pneg %p273
        %p575 = pneg %p297
        %p576 = pneg %p294
        %p577 = pneg %p323
        %p578 = pneg %p320
        %s579 = sand.u32 %s310, 1
        %s580 = scalar_lea.sflag [#allocation4], %s579
        %s581 = sand.u32 %s310, 1
        %s582 = smul.addr %s581, 64
        %s583 = scalar_lea.vmem [#allocation16], %s582
        %s584 = smul.u32 4, %s35
        %s585 = smul.u32 4, %s35
        %s586 = smul.u32 4, %s35
        %s587 = smul.u32 4, %s35
        %v588 = vld [vmem:[%s495] sm:$0xff]
        %v589 = vld [vmem:[%s495 + $0x8] sm:$0xff]
        %v590 = vld [vmem:[%s495 + $0x10] sm:$0xff]
        %v591 = vld [vmem:[%s495 + $0x18] sm:$0xff]
        %v592 = vld [vmem:[%s495 + $0x20] sm:$0xff]
        %v593 = vld [vmem:[%s495 + $0x28] sm:$0xff]
        %v594 = vld [vmem:[%s495 + $0x30] sm:$0xff]
        %v595 = vld [vmem:[%s495 + $0x38] sm:$0xff]
        %v596 = vld [vmem:[%s504] sm:$0xff]
        %v597 = vld [vmem:[%s504 + $0x8] sm:$0xff]
        %v598 = vld [vmem:[%s504 + $0x10] sm:$0xff]
        %v599 = vld [vmem:[%s504 + $0x18] sm:$0xff]
        %v600 = vld [vmem:[%s504 + $0x20] sm:$0xff]
        %v601 = vld [vmem:[%s504 + $0x28] sm:$0xff]
        %v602 = vld [vmem:[%s504 + $0x30] sm:$0xff]
        %v603 = vld [vmem:[%s504 + $0x38] sm:$0xff]
        %v604 = vld [vmem:[%s513] sm:$0x1]
        %v605 = vld [vmem:[%s513 + $0x1] sm:$0x1]
        %v606 = vld [vmem:[%s513 + $0x2] sm:$0x1]
        %v607 = vld [vmem:[%s513 + $0x3] sm:$0x1]
        %v608 = vld [vmem:[#allocation8] sm:$0xff]
        %v609 = vld [vmem:[#allocation8 + $0x8] sm:$0xff]
        %v610 = vld [vmem:[#allocation8 + $0x10] sm:$0xff]
        %v611 = vld [vmem:[#allocation8 + $0x18] sm:$0xff]
        %v612 = vld [vmem:[#allocation8 + $0x20] sm:$0xff]
        %v613 = vld [vmem:[#allocation8 + $0x28] sm:$0xff]
        %v614 = vld [vmem:[#allocation8 + $0x30] sm:$0xff]
        %v615 = vld [vmem:[#allocation8 + $0x38] sm:$0xff]
        %v616 = vld [vmem:[#allocation8 + $0x40] sm:$0xff]
        %v617 = vld [vmem:[#allocation8 + $0x48] sm:$0xff]
        %v618 = vld [vmem:[#allocation8 + $0x50] sm:$0xff]
        %v619 = vld [vmem:[#allocation8 + $0x58] sm:$0xff]
        %v620 = vld [vmem:[#allocation8 + $0x60] sm:$0xff]
        %v621 = vld [vmem:[#allocation8 + $0x68] sm:$0xff]
        %v622 = vld [vmem:[#allocation8 + $0x70] sm:$0xff]
        %v623 = vld [vmem:[#allocation8 + $0x78] sm:$0xff]
        %v624 = vld [vmem:[#allocation8 + $0x80] sm:$0xff]
        %v625 = vld [vmem:[#allocation8 + $0x88] sm:$0xff]
        %v626 = vld [vmem:[#allocation8 + $0x90] sm:$0xff]
        %v627 = vld [vmem:[#allocation8 + $0x98] sm:$0xff]
        %v628 = vld [vmem:[#allocation8 + $0xa0] sm:$0xff]
        %v629 = vld [vmem:[#allocation8 + $0xa8] sm:$0xff]
        %v630 = vld [vmem:[#allocation8 + $0xb0] sm:$0xff]
        %v631 = vld [vmem:[#allocation8 + $0xb8] sm:$0xff]
        %v632 = vld [vmem:[#allocation8 + $0xc0] sm:$0xff]
        %v633 = vld [vmem:[#allocation8 + $0xc8] sm:$0xff]
        %v634 = vld [vmem:[#allocation8 + $0xd0] sm:$0xff]
        %v635 = vld [vmem:[#allocation8 + $0xd8] sm:$0xff]
        %v636 = vld [vmem:[#allocation8 + $0xe0] sm:$0xff]
        %v637 = vld [vmem:[#allocation8 + $0xe8] sm:$0xff]
        %v638 = vld [vmem:[#allocation8 + $0xf0] sm:$0xff]
        %v639 = vld [vmem:[#allocation8 + $0xf8] sm:$0xff]
        %v640 = vld [vmem:[%s4] sm:$0x1]
        %v641 = vld [vmem:[#allocation10] sm:$0xff]
        %v642 = vld [vmem:[#allocation10 + $0x8] sm:$0xff]
        %v643 = vld [vmem:[#allocation10 + $0x10] sm:$0xff]
        %v644 = vld [vmem:[#allocation10 + $0x18] sm:$0xff]
        %v645 = vld [vmem:[#allocation10 + $0x20] sm:$0xff]
        %v646 = vld [vmem:[#allocation10 + $0x28] sm:$0xff]
        %v647 = vld [vmem:[#allocation10 + $0x30] sm:$0xff]
        %v648 = vld [vmem:[#allocation10 + $0x38] sm:$0xff]
        %v649 = vld [vmem:[#allocation10 + $0x40] sm:$0xff]
        %v650 = vld [vmem:[#allocation10 + $0x48] sm:$0xff]
        %v651 = vld [vmem:[#allocation10 + $0x50] sm:$0xff]
        %v652 = vld [vmem:[#allocation10 + $0x58] sm:$0xff]
        %v653 = vld [vmem:[#allocation10 + $0x60] sm:$0xff]
        %v654 = vld [vmem:[#allocation10 + $0x68] sm:$0xff]
        %v655 = vld [vmem:[#allocation10 + $0x70] sm:$0xff]
        %v656 = vld [vmem:[#allocation10 + $0x78] sm:$0xff]
        %v657 = vld [vmem:[%s6] sm:$0x1]
        %v658 = vld [vmem:[#allocation11] sm:$0xff]
        %v659 = vld [vmem:[#allocation11 + $0x8] sm:$0xff]
        %v660 = vld [vmem:[#allocation11 + $0x10] sm:$0xff]
        %v661 = vld [vmem:[#allocation11 + $0x18] sm:$0xff]
        %v662 = vld [vmem:[#allocation11 + $0x20] sm:$0xff]
        %v663 = vld [vmem:[#allocation11 + $0x28] sm:$0xff]
        %v664 = vld [vmem:[#allocation11 + $0x30] sm:$0xff]
        %v665 = vld [vmem:[#allocation11 + $0x38] sm:$0xff]
        %v666 = vld [vmem:[#allocation11 + $0x40] sm:$0xff]
        %v667 = vld [vmem:[#allocation11 + $0x48] sm:$0xff]
        %v668 = vld [vmem:[#allocation11 + $0x50] sm:$0xff]
        %v669 = vld [vmem:[#allocation11 + $0x58] sm:$0xff]
        %v670 = vld [vmem:[#allocation11 + $0x60] sm:$0xff]
        %v671 = vld [vmem:[#allocation11 + $0x68] sm:$0xff]
        %v672 = vld [vmem:[#allocation11 + $0x70] sm:$0xff]
        %v673 = vld [vmem:[#allocation11 + $0x78] sm:$0xff]
        %v674 = vld [vmem:[#allocation11 + $0x80] sm:$0xff]
        %v675 = vld [vmem:[#allocation11 + $0x88] sm:$0xff]
        %v676 = vld [vmem:[#allocation11 + $0x90] sm:$0xff]
        %v677 = vld [vmem:[#allocation11 + $0x98] sm:$0xff]
        %v678 = vld [vmem:[#allocation11 + $0xa0] sm:$0xff]
        %v679 = vld [vmem:[#allocation11 + $0xa8] sm:$0xff]
        %v680 = vld [vmem:[#allocation11 + $0xb0] sm:$0xff]
        %v681 = vld [vmem:[#allocation11 + $0xb8] sm:$0xff]
        %v682 = vld [vmem:[#allocation11 + $0xc0] sm:$0xff]
        %v683 = vld [vmem:[#allocation11 + $0xc8] sm:$0xff]
        %v684 = vld [vmem:[#allocation11 + $0xd0] sm:$0xff]
        %v685 = vld [vmem:[#allocation11 + $0xd8] sm:$0xff]
        %v686 = vld [vmem:[#allocation11 + $0xe0] sm:$0xff]
        %v687 = vld [vmem:[#allocation11 + $0xe8] sm:$0xff]
        %v688 = vld [vmem:[#allocation11 + $0xf0] sm:$0xff]
        %v689 = vld [vmem:[#allocation11 + $0xf8] sm:$0xff]
        %v690 = vld [vmem:[%s8] sm:$0x1]
        %v691 = vld [vmem:[#allocation13] sm:$0xff]
        %v692 = vld [vmem:[#allocation13 + $0x8] sm:$0xff]
        %v693 = vld [vmem:[#allocation13 + $0x10] sm:$0xff]
        %v694 = vld [vmem:[#allocation13 + $0x18] sm:$0xff]
        %v695 = vld [vmem:[#allocation13 + $0x20] sm:$0xff]
        %v696 = vld [vmem:[#allocation13 + $0x28] sm:$0xff]
        %v697 = vld [vmem:[#allocation13 + $0x30] sm:$0xff]
        %v698 = vld [vmem:[#allocation13 + $0x38] sm:$0xff]
        %v699 = vld [vmem:[#allocation13 + $0x40] sm:$0xff]
        %v700 = vld [vmem:[#allocation13 + $0x48] sm:$0xff]
        %v701 = vld [vmem:[#allocation13 + $0x50] sm:$0xff]
        %v702 = vld [vmem:[#allocation13 + $0x58] sm:$0xff]
        %v703 = vld [vmem:[#allocation13 + $0x60] sm:$0xff]
        %v704 = vld [vmem:[#allocation13 + $0x68] sm:$0xff]
        %v705 = vld [vmem:[#allocation13 + $0x70] sm:$0xff]
        %v706 = vld [vmem:[#allocation13 + $0x78] sm:$0xff]
        %v707 = vld [vmem:[#allocation14] sm:$0xff]
        %v708 = vld [vmem:[#allocation14 + $0x8] sm:$0xff]
        %v709 = vld [vmem:[#allocation14 + $0x10] sm:$0xff]
        %v710 = vld [vmem:[#allocation14 + $0x18] sm:$0xff]
        %v711 = vld [vmem:[#allocation14 + $0x20] sm:$0xff]
        %v712 = vld [vmem:[#allocation14 + $0x28] sm:$0xff]
        %v713 = vld [vmem:[#allocation14 + $0x30] sm:$0xff]
        %v714 = vld [vmem:[#allocation14 + $0x38] sm:$0xff]
        %v715 = vld [vmem:[#allocation14 + $0x40] sm:$0xff]
        %v716 = vld [vmem:[#allocation14 + $0x48] sm:$0xff]
        %v717 = vld [vmem:[#allocation14 + $0x50] sm:$0xff]
        %v718 = vld [vmem:[#allocation14 + $0x58] sm:$0xff]
        %v719 = vld [vmem:[#allocation14 + $0x60] sm:$0xff]
        %v720 = vld [vmem:[#allocation14 + $0x68] sm:$0xff]
        %v721 = vld [vmem:[#allocation14 + $0x70] sm:$0xff]
        %v722 = vld [vmem:[#allocation14 + $0x78] sm:$0xff]
        %v723 = vld [vmem:[%s11] sm:$0x1]
        %v724 = vadd.f32 %v596, %v597
        %v725 = vrot.slane %v724, 4
        %v726 = vadd.f32 %v724, %v725
        %v727 = vrot.slane %v726, 2
        %v728 = vadd.f32 %v726, %v727
        %v729 = vrot.slane %v728, 1
        %v730 = vadd.f32 %v728, %v729
        %v731 = vadd.f32 %v598, %v599
        %v732 = vrot.slane %v731, 4
        %v733 = vadd.f32 %v731, %v732
        %v734 = vrot.slane %v733, 2
        %v735 = vadd.f32 %v733, %v734
        %v736 = vrot.slane %v735, 1
        %v737 = vadd.f32 %v735, %v736
        %v738 = vadd.f32 %v600, %v601
        %v739 = vrot.slane %v738, 4
        %v740 = vadd.f32 %v738, %v739
        %v741 = vrot.slane %v740, 2
        %v742 = vadd.f32 %v740, %v741
        %v743 = vrot.slane %v742, 1
        %v744 = vadd.f32 %v742, %v743
        %v745 = vadd.f32 %v602, %v603
        %v746 = vrot.slane %v745, 4
        %v747 = vadd.f32 %v745, %v746
        %v748 = vrot.slane %v747, 2
        %v749 = vadd.f32 %v747, %v748
        %v750 = vrot.slane %v749, 1
        %v751 = vadd.f32 %v749, %v750
        %v752 = vmul.f32 %v657, 16.0
        %v754 = vlaneseq
        %v755 = vshrl.u32 %v754, 7
        %v756 = vsub.s32 0, %v755
        %v757 = vrot.slane %v752, %v756
        %vm763 = vcmask 1041409
        %v764 = vsel %vm763, %v737, %v730
        %vm765 = vcmask 1042434
        %v766 = vsel %vm765, %v744, %v764
        %vm767 = vcmask 1043459
        %v768 = vsel %vm767, %v751, %v766
        %770 = vmatprep.subr.mxu0 0.0
        %771 = vmatpush1.msra.mxu0 %v641
        %772 = vmatprep.subr.mxu0 0.0
        %773 = vmatpush1.msra.mxu0 %v642
        %774 = vmatprep.subr.mxu0 0.0
        %775 = vmatpush1.msra.mxu0 %v643
        %776 = vmatprep.subr.mxu0 0.0
        %777 = vmatpush1.msra.mxu0 %v644
        %778 = vmatprep.subr.mxu0 0.0
        %779 = vmatpush1.msra.mxu0 %v645
        %780 = vmatprep.subr.mxu0 0.0
        %781 = vmatpush1.msra.mxu0 %v646
        %782 = vmatprep.subr.mxu0 0.0
        %783 = vmatpush1.msra.mxu0 %v647
        %784 = vmatprep.subr.mxu0 0.0
        %785 = vmatpush1.msra.mxu0 %v648
        %786 = vmatprep.subr.mxu0 0.0
        %787 = vmatpush1.msra.mxu0 %v649
        %788 = vmatprep.subr.mxu0 0.0
        %789 = vmatpush1.msra.mxu0 %v650
        %790 = vmatprep.subr.mxu0 0.0
        %791 = vmatpush1.msra.mxu0 %v651
        %792 = vmatprep.subr.mxu0 0.0
        %793 = vmatpush1.msra.mxu0 %v652
        %794 = vmatprep.subr.mxu0 0.0
        %795 = vmatpush1.msra.mxu0 %v653
        %796 = vmatprep.subr.mxu0 0.0
        %797 = vmatpush1.msra.mxu0 %v654
        %798 = vmatprep.subr.mxu0 0.0
        %799 = vmatpush1.msra.mxu0 %v655
        %800 = vmatprep.subr.mxu0 0.0
        %801 = vmatpush1.msra.mxu0 %v656
        %802 = vmatprep.subr.mxu0 0.0
        %803 = vmatpush1.msra.mxu0 0.0
        %804 = vmatprep.subr.mxu0 0.0
        %805 = vmatpush1.msra.mxu0 0.0
        %806 = vmatprep.subr.mxu0 0.0
        %807 = vmatpush1.msra.mxu0 0.0
        %808 = vmatprep.subr.mxu0 0.0
        %809 = vmatpush1.msra.mxu0 0.0
        %810 = vmatprep.subr.mxu0 0.0
        %811 = vmatpush1.msra.mxu0 0.0
        %812 = vmatprep.subr.mxu0 0.0
        %813 = vmatpush1.msra.mxu0 0.0
        %814 = vmatprep.subr.mxu0 0.0
        %815 = vmatpush1.msra.mxu0 0.0
        %816 = vmatprep.subr.mxu0 0.0
        %817 = vmatpush1.msra.mxu0 0.0
        %818 = vmatprep.subr.mxu0 0.0
        %819 = vmatpush1.msra.mxu0 0.0
        %820 = vmatprep.subr.mxu0 0.0
        %821 = vmatpush1.msra.mxu0 0.0
        %822 = vmatprep.subr.mxu0 0.0
        %823 = vmatpush1.msra.mxu0 0.0
        %824 = vmatprep.subr.mxu0 0.0
        %825 = vmatpush1.msra.mxu0 0.0
        %826 = vmatprep.subr.mxu0 0.0
        %827 = vmatpush1.msra.mxu0 0.0
        %828 = vmatprep.subr.mxu0 0.0
        %829 = vmatpush1.msra.mxu0 0.0
        %830 = vmatprep.subr.mxu0 0.0
        %831 = vmatpush1.msra.mxu0 0.0
        %832 = vmatprep.subr.mxu0 0.0
        %833 = vmatpush1.msra.mxu0 0.0
        %834 = vmatprep.mubr.f32.mxu0 0.0
        %835 = vmatmul.mubr.f32.gmra.mrb[0].mxu0 %v768
        %v836 = vpop.f32.mrb[0].mxu0
        %v837 = vadd.f32 %v757, %v836
        %v838 = vpop.f32.mrb[0].mxu0
        %839 = vdwg.mxu0
        %v841 = vlaneseq
        %v842 = vshrl.u32 %v841, 7
        %v843 = vsub.s32 0, %v842
        %v844 = vrot.slane %v640, %v843
        %846 = vmatprep.subr.mxu0 0.0
        %847 = vmatpush1.msra.mxu0 %v608
        %848 = vmatprep.subr.mxu0 0.0
        %849 = vmatpush1.msra.mxu0 %v609
        %850 = vmatprep.subr.mxu0 0.0
        %851 = vmatpush1.msra.mxu0 %v610
        %852 = vmatprep.subr.mxu0 0.0
        %853 = vmatpush1.msra.mxu0 %v611
        %854 = vmatprep.subr.mxu0 0.0
        %855 = vmatpush1.msra.mxu0 %v612
        %856 = vmatprep.subr.mxu0 0.0
        %857 = vmatpush1.msra.mxu0 %v613
        %858 = vmatprep.subr.mxu0 0.0
        %859 = vmatpush1.msra.mxu0 %v614
        %860 = vmatprep.subr.mxu0 0.0
        %861 = vmatpush1.msra.mxu0 %v615
        %862 = vmatprep.subr.mxu0 0.0
        %863 = vmatpush1.msra.mxu0 %v616
        %864 = vmatprep.subr.mxu0 0.0
        %865 = vmatpush1.msra.mxu0 %v617
        %866 = vmatprep.subr.mxu0 0.0
        %867 = vmatpush1.msra.mxu0 %v618
        %868 = vmatprep.subr.mxu0 0.0
        %869 = vmatpush1.msra.mxu0 %v619
        %870 = vmatprep.subr.mxu0 0.0
        %871 = vmatpush1.msra.mxu0 %v620
        %872 = vmatprep.subr.mxu0 0.0
        %873 = vmatpush1.msra.mxu0 %v621
        %874 = vmatprep.subr.mxu0 0.0
        %875 = vmatpush1.msra.mxu0 %v622
        %876 = vmatprep.subr.mxu0 0.0
        %877 = vmatpush1.msra.mxu0 %v623
        %878 = vmatprep.subr.mxu0 0.0
        %879 = vmatpush1.msra.mxu0 %v624
        %880 = vmatprep.subr.mxu0 0.0
        %881 = vmatpush1.msra.mxu0 %v625
        %882 = vmatprep.subr.mxu0 0.0
        %883 = vmatpush1.msra.mxu0 %v626
        %884 = vmatprep.subr.mxu0 0.0
        %885 = vmatpush1.msra.mxu0 %v627
        %886 = vmatprep.subr.mxu0 0.0
        %887 = vmatpush1.msra.mxu0 %v628
        %888 = vmatprep.subr.mxu0 0.0
        %889 = vmatpush1.msra.mxu0 %v629
        %890 = vmatprep.subr.mxu0 0.0
        %891 = vmatpush1.msra.mxu0 %v630
        %892 = vmatprep.subr.mxu0 0.0
        %893 = vmatpush1.msra.mxu0 %v631
        %894 = vmatprep.subr.mxu0 0.0
        %895 = vmatpush1.msra.mxu0 %v632
        %896 = vmatprep.subr.mxu0 0.0
        %897 = vmatpush1.msra.mxu0 %v633
        %898 = vmatprep.subr.mxu0 0.0
        %899 = vmatpush1.msra.mxu0 %v634
        %900 = vmatprep.subr.mxu0 0.0
        %901 = vmatpush1.msra.mxu0 %v635
        %902 = vmatprep.subr.mxu0 0.0
        %903 = vmatpush1.msra.mxu0 %v636
        %904 = vmatprep.subr.mxu0 0.0
        %905 = vmatpush1.msra.mxu0 %v637
        %906 = vmatprep.subr.mxu0 0.0
        %907 = vmatpush1.msra.mxu0 %v638
        %908 = vmatprep.subr.mxu0 0.0
        %909 = vmatpush1.msra.mxu0 %v639
        %910 = vmatprep.mubr.f32.mxu0 %v589
        %911 = vmatmul.mubr.f32.gmra.mrb[0].mxu0 %v588
        %v912 = vpop.f32.mrb[0].mxu0
        %v913 = vadd.f32 %v844, %v912
        %v914 = vpop.f32.mrb[0].mxu0
        %915 = vmatprep.mubr.f32.mxu0 %v591
        %916 = vmatmul.mubr.f32.gmra.mrb[0].mxu0 %v590
        %v917 = vpop.f32.mrb[0].mxu0
        %v918 = vadd.f32 %v844, %v917
        %v919 = vpop.f32.mrb[0].mxu0
        %920 = vmatprep.mubr.f32.mxu0 %v593
        %921 = vmatmul.mubr.f32.gmra.mrb[0].mxu0 %v592
        %v922 = vpop.f32.mrb[0].mxu0
        %v923 = vadd.f32 %v844, %v922
        %v924 = vpop.f32.mrb[0].mxu0
        %925 = vmatprep.mubr.f32.mxu0 %v595
        %926 = vmatmul.mubr.f32.gmra.mrb[0].mxu0 %v594
        %v927 = vpop.f32.mrb[0].mxu0
        %v928 = vadd.f32 %v844, %v927
        %v929 = vpop.f32.mrb[0].mxu0
        %930 = vdwg.mxu0
        %v933 = vunpack.c.l.s4 1966171168
        %v934 = vunpack.c.0.s8 %v933
        %v935 = vlaneseq
        %v936 = vshrl.u32 %v935, 7
        %v937 = vsub.s32 %v934, %v936
        %v938 = vrot.slane %v837, %v937
        %v939 = vcombine.high %v938, %v938
        %v941 = vunpack.c.l.s4 1966171168
        %v942 = vunpack.c.0.s8 %v941
        %v943 = vlaneseq
        %v944 = vshrl.u32 %v943, 7
        %v945 = vsub.s32 %v942, %v944
        %v946 = vrot.slane %v938, %v945
        %v948 = vunpack.c.l.s4 1966171168
        %v949 = vunpack.c.0.s8 %v948
        %v950 = vlaneseq
        %v951 = vshrl.u32 %v950, 7
        %v952 = vsub.s32 %v949, %v951
        %v953 = vrot.slane %v939, %v952
        %v954 = vcombine.high %v946, %v946
        %v955 = vcombine.high %v953, %v953
        %v956 = vlaneseq
        %v957 = vshrl.u32 %v956, 7
        %v958 = vsub.s32 0, %v957
        %v959 = vrot.slane %v946, %v958
        %v960 = vlaneseq
        %v961 = vshrl.u32 %v960, 7
        %v962 = vsub.s32 0, %v961
        %v963 = vrot.slane %v953, %v962
        %v964 = vlaneseq
        %v965 = vshrl.u32 %v964, 7
        %v966 = vsub.s32 0, %v965
        %v967 = vrot.slane %v954, %v966
        %v968 = vlaneseq
        %v969 = vshrl.u32 %v968, 7
        %v970 = vsub.s32 0, %v969
        %v971 = vrot.slane %v955, %v970
        %v976 = vmul.f32 %v913, %v959
        %v977 = vmul.f32 %v918, %v963
        %v978 = vmul.f32 %v923, %v967
        %v979 = vmul.f32 %v928, %v971
        %980 = vadd.xlane.f32.xlu0 %v976
        %v981 = vpop.xlane.xlu0 %980
        %982 = vadd.xlane.f32.xlu0 %v977
        %v983 = vpop.xlane.xlu0 %982
        %984 = vadd.xlane.f32.xlu0 %v978
        %v985 = vpop.xlane.xlu0 %984
        %986 = vadd.xlane.f32.xlu0 %v979
        %v987 = vpop.xlane.xlu0 %986
        %v992 = vlaneseq
        %v993 = vshrl.u32 %v992, 7
        %v994 = vsub.s32 0, %v993
        %v995 = vrot.slane %v604, %v994
        %v996 = vlaneseq
        %v997 = vshrl.u32 %v996, 7
        %v998 = vsub.s32 0, %v997
        %v999 = vrot.slane %v605, %v998
        %v1000 = vlaneseq
        %v1001 = vshrl.u32 %v1000, 7
        %v1002 = vsub.s32 0, %v1001
        %v1003 = vrot.slane %v606, %v1002
        %v1004 = vlaneseq
        %v1005 = vshrl.u32 %v1004, 7
        %v1006 = vsub.s32 0, %v1005
        %v1007 = vrot.slane %v607, %v1006
        %1009 = vbcast.lane.b32.xlu0 %v995, 256
        %v1010 = vpop.permute.xlu0 %1009
        %1012 = vbcast.lane.b32.xlu0 %v999, 256
        %v1013 = vpop.permute.xlu0 %1012
        %1015 = vbcast.lane.b32.xlu0 %v1003, 256
        %v1016 = vpop.permute.xlu0 %1015
        %1018 = vbcast.lane.b32.xlu0 %v1007, 256
        %v1019 = vpop.permute.xlu0 %1018
        %v1024 = vmul.f32 %v981, %v1010
        %v1025 = vmul.f32 %v983, %v1013
        %v1026 = vmul.f32 %v985, %v1016
        %v1027 = vmul.f32 %v987, %v1019
        %v1028 = vmul.f32 %v1024, %v1024
        %v1029 = vmul.f32 %v1025, %v1025
        %v1030 = vmul.f32 %v1026, %v1026
        %v1031 = vmul.f32 %v1027, %v1027
        %1036 = vset.pattern.permute.xlu0 0
        %1037 = vperm.xlu0 %1036, %v1028
        %v1038 = vpop.permute.xlu0 %1037
        %1039 = vset.pattern.permute.xlu0 0
        %1040 = vperm.xlu0 %1039, %v1029
        %v1041 = vpop.permute.xlu0 %1040
        %1042 = vset.pattern.permute.xlu0 0
        %1043 = vperm.xlu0 %1042, %v1030
        %v1044 = vpop.permute.xlu0 %1043
        %1045 = vset.pattern.permute.xlu0 0
        %1046 = vperm.xlu0 %1045, %v1031
        %v1047 = vpop.permute.xlu0 %1046
        %v1048 = vlaneseq
        %v1049 = vand.u32 %v1048, 127
        %v1050 = vlaneseq
        %v1051 = vshrl.u32 %v1050, 7
        %v1052 = vsub.s32 %v1049, %v1051
        %v1053 = vrot.slane %v1038, %v1052
        %v1054 = vlaneseq
        %v1055 = vshrl.u32 %v1054, 7
        %v1056 = vsub.s32 %v1049, %v1055
        %v1057 = vrot.slane %v1041, %v1056
        %v1058 = vlaneseq
        %v1059 = vshrl.u32 %v1058, 7
        %v1060 = vsub.s32 %v1049, %v1059
        %v1061 = vrot.slane %v1044, %v1060
        %v1062 = vlaneseq
        %v1063 = vshrl.u32 %v1062, 7
        %v1064 = vsub.s32 %v1049, %v1063
        %v1065 = vrot.slane %v1047, %v1064
        %v1066 = vsel %vm763, %v1057, %v1053
        %v1067 = vsel %vm765, %v1061, %v1066
        %v1068 = vsel %vm767, %v1065, %v1067
        %vm1070 = vcmask 60416
        %v1071 = vsel %vm1070, %v1068, 0.0
        %1072 = vadd.xlane.f32.xlu0 %v1071
        %v1073 = vpop.xlane.xlu0 %1072
        %v1074 = vrsqrt.pop %v1073
        %v1075 = vmul.f32 %v1073, %v1074
        %vm1076 = vcmp.eq.f32.partialorder %v1073, inf
        %v1077 = vsel %vm1076, %v1073, %v1075
        %vm1078 = vcmp.eq.f32.partialorder %v1073, 0.0
        %v1079 = vand.u32 %v1073, 2147483648
        %v1080 = vsel %vm1078, %v1079, %v1077
        %v1081 = vrcp.pop %v1080
        %v1083 = vlaneseq
        %v1084 = vshrl.u32 %v1083, 7
        %v1085 = vsub.s32 0, %v1084
        %v1086 = vrot.slane %v1081, %v1085
        %v1087 = vlaneseq
        %v1088 = vshrl.u32 %v1087, 7
        %v1089 = vsub.s32 1, %v1088
        %v1090 = vrot.slane %v1081, %v1089
        %v1091 = vlaneseq
        %v1092 = vshrl.u32 %v1091, 7
        %v1093 = vsub.s32 2, %v1092
        %v1094 = vrot.slane %v1081, %v1093
        %v1095 = vlaneseq
        %v1096 = vshrl.u32 %v1095, 7
        %v1097 = vsub.s32 3, %v1096
        %v1098 = vrot.slane %v1081, %v1097
        %v1103 = vmul.f32 %v1024, %v1086
        %v1104 = vmul.f32 %v1025, %v1090
        %v1105 = vmul.f32 %v1026, %v1094
        %v1106 = vmul.f32 %v1027, %v1098
        %v1107 = vmul.f32 %v1103, 1.442695
        %v1108 = vpow.pop %v1107
        %v1109 = vmul.f32 %v1104, 1.442695
        %v1110 = vpow.pop %v1109
        %v1111 = vmul.f32 %v1105, 1.442695
        %v1112 = vpow.pop %v1111
        %v1113 = vmul.f32 %v1106, 1.442695
        %v1114 = vpow.pop %v1113
        %1119 = vset.pattern.permute.xlu0 0
        %1120 = vperm.xlu0 %1119, %v1108
        %v1121 = vpop.permute.xlu0 %1120
        %1122 = vset.pattern.permute.xlu0 0
        %1123 = vperm.xlu0 %1122, %v1110
        %v1124 = vpop.permute.xlu0 %1123
        %1125 = vset.pattern.permute.xlu0 0
        %1126 = vperm.xlu0 %1125, %v1112
        %v1127 = vpop.permute.xlu0 %1126
        %1128 = vset.pattern.permute.xlu0 0
        %1129 = vperm.xlu0 %1128, %v1114
        %v1130 = vpop.permute.xlu0 %1129
        %v1131 = vlaneseq
        %v1132 = vshrl.u32 %v1131, 7
        %v1133 = vsub.s32 %v1049, %v1132
        %v1134 = vrot.slane %v1121, %v1133
        %v1135 = vlaneseq
        %v1136 = vshrl.u32 %v1135, 7
        %v1137 = vsub.s32 %v1049, %v1136
        %v1138 = vrot.slane %v1124, %v1137
        %v1139 = vlaneseq
        %v1140 = vshrl.u32 %v1139, 7
        %v1141 = vsub.s32 %v1049, %v1140
        %v1142 = vrot.slane %v1127, %v1141
        %v1143 = vlaneseq
        %v1144 = vshrl.u32 %v1143, 7
        %v1145 = vsub.s32 %v1049, %v1144
        %v1146 = vrot.slane %v1130, %v1145
        %v1147 = vsel %vm763, %v1138, %v1134
        %v1148 = vsel %vm765, %v1142, %v1147
        %v1149 = vsel %vm767, %v1146, %v1148
        %v1151 = vsel %vm1070, %v1149, 0.0
        %1152 = vadd.xlane.f32.xlu0 %v1151
        %v1153 = vpop.xlane.xlu0 %1152
        %v1154 = vsub.f32 %v1153, 1.0
        %v1155 = vrcp.pop %v1154
        %v1157 = vlaneseq
        %v1158 = vshrl.u32 %v1157, 7
        %v1159 = vsub.s32 0, %v1158
        %v1160 = vrot.slane %v1155, %v1159
        %v1161 = vlaneseq
        %v1162 = vshrl.u32 %v1161, 7
        %v1163 = vsub.s32 1, %v1162
        %v1164 = vrot.slane %v1155, %v1163
        %v1165 = vlaneseq
        %v1166 = vshrl.u32 %v1165, 7
        %v1167 = vsub.s32 2, %v1166
        %v1168 = vrot.slane %v1155, %v1167
        %v1169 = vlaneseq
        %v1170 = vshrl.u32 %v1169, 7
        %v1171 = vsub.s32 3, %v1170
        %v1172 = vrot.slane %v1155, %v1171
        %v1177 = vmul.f32 %v1108, %v1160
        %v1178 = vmul.f32 %v1110, %v1164
        %v1179 = vmul.f32 %v1112, %v1168
        %v1180 = vmul.f32 %v1114, %v1172
        %v1181 = vmul.f32 %v1177, %v1010
        %v1182 = vmul.f32 %v1178, %v1013
        %v1183 = vmul.f32 %v1179, %v1016
        %v1184 = vmul.f32 %v1180, %v1019
        %1186 = vset.pattern.permute.xlu0 0
        %1187 = vperm.xlu0 %1186, %v1181
        %v1188 = vpop.permute.xlu0 %1187
        %1191 = vset.pattern.permute.xlu0 0
        %1192 = vperm.xlu0 %1191, %v1182
        %v1193 = vpop.permute.xlu0 %1192
        %1196 = vset.pattern.permute.xlu0 0
        %1197 = vperm.xlu0 %1196, %v1183
        %v1198 = vpop.permute.xlu0 %1197
        %1201 = vset.pattern.permute.xlu0 0
        %1202 = vperm.xlu0 %1201, %v1184
        %v1203 = vpop.permute.xlu0 %1202
        %v1205 = vmul.f32 %v1188, %v588
        %v1206 = vmul.f32 %v1188, %v589
        %v1207 = vmul.f32 %v1193, %v590
        %v1208 = vmul.f32 %v1193, %v591
        %v1209 = vmul.f32 %v1198, %v592
        %v1210 = vmul.f32 %v1198, %v593
        %v1211 = vmul.f32 %v1203, %v594
        %v1212 = vmul.f32 %v1203, %v595
        %v1213 = vrot.slane %v1205, 4
        %v1214 = vadd.f32 %v1205, %v1213
        %v1215 = vrot.slane %v1214, 2
        %v1216 = vadd.f32 %v1214, %v1215
        %v1217 = vrot.slane %v1216, 1
        %v1218 = vadd.f32 %v1216, %v1217
        %v1219 = vrot.slane %v1206, 4
        %v1220 = vadd.f32 %v1206, %v1219
        %v1221 = vrot.slane %v1220, 2
        %v1222 = vadd.f32 %v1220, %v1221
        %v1223 = vrot.slane %v1222, 1
        %v1224 = vadd.f32 %v1222, %v1223
        %v1225 = vrot.slane %v1207, 4
        %v1226 = vadd.f32 %v1207, %v1225
        %v1227 = vrot.slane %v1226, 2
        %v1228 = vadd.f32 %v1226, %v1227
        %v1229 = vrot.slane %v1228, 1
        %v1230 = vadd.f32 %v1228, %v1229
        %v1231 = vrot.slane %v1208, 4
        %v1232 = vadd.f32 %v1208, %v1231
        %v1233 = vrot.slane %v1232, 2
        %v1234 = vadd.f32 %v1232, %v1233
        %v1235 = vrot.slane %v1234, 1
        %v1236 = vadd.f32 %v1234, %v1235
        %v1237 = vrot.slane %v1209, 4
        %v1238 = vadd.f32 %v1209, %v1237
        %v1239 = vrot.slane %v1238, 2
        %v1240 = vadd.f32 %v1238, %v1239
        %v1241 = vrot.slane %v1240, 1
        %v1242 = vadd.f32 %v1240, %v1241
        %v1243 = vrot.slane %v1210, 4
        %v1244 = vadd.f32 %v1210, %v1243
        %v1245 = vrot.slane %v1244, 2
        %v1246 = vadd.f32 %v1244, %v1245
        %v1247 = vrot.slane %v1246, 1
        %v1248 = vadd.f32 %v1246, %v1247
        %v1249 = vrot.slane %v1211, 4
        %v1250 = vadd.f32 %v1211, %v1249
        %v1251 = vrot.slane %v1250, 2
        %v1252 = vadd.f32 %v1250, %v1251
        %v1253 = vrot.slane %v1252, 1
        %v1254 = vadd.f32 %v1252, %v1253
        %v1255 = vrot.slane %v1212, 4
        %v1256 = vadd.f32 %v1212, %v1255
        %v1257 = vrot.slane %v1256, 2
        %v1258 = vadd.f32 %v1256, %v1257
        %v1259 = vrot.slane %v1258, 1
        %v1260 = vadd.f32 %v1258, %v1259
        %v1262 = vlaneseq
        %v1263 = vshrl.u32 %v1262, 7
        %v1264 = vsub.s32 0, %v1263
        %v1265 = vrot.slane %v690, %v1264
        %v1275 = vsel %vm763, %v1230, %v1218
        %v1276 = vsel %vm765, %v1242, %v1275
        %v1277 = vsel %vm767, %v1254, %v1276
        %v1278 = vsel %vm763, %v1236, %v1224
        %v1279 = vsel %vm765, %v1248, %v1278
        %v1280 = vsel %vm767, %v1260, %v1279
        %1283 = vmatprep.subr.mxu0 0.0
        %1284 = vmatpush1.msra.mxu0 %v658
        %1285 = vmatprep.subr.mxu0 0.0
        %1286 = vmatpush1.msra.mxu0 %v659
        %1287 = vmatprep.subr.mxu0 0.0
        %1288 = vmatpush1.msra.mxu0 %v660
        %1289 = vmatprep.subr.mxu0 0.0
        %1290 = vmatpush1.msra.mxu0 %v661
        %1291 = vmatprep.subr.mxu0 0.0
        %1292 = vmatpush1.msra.mxu0 %v662
        %1293 = vmatprep.subr.mxu0 0.0
        %1294 = vmatpush1.msra.mxu0 %v663
        %1295 = vmatprep.subr.mxu0 0.0
        %1296 = vmatpush1.msra.mxu0 %v664
        %1297 = vmatprep.subr.mxu0 0.0
        %1298 = vmatpush1.msra.mxu0 %v665
        %1299 = vmatprep.subr.mxu0 0.0
        %1300 = vmatpush1.msra.mxu0 %v666
        %1301 = vmatprep.subr.mxu0 0.0
        %1302 = vmatpush1.msra.mxu0 %v667
        %1303 = vmatprep.subr.mxu0 0.0
        %1304 = vmatpush1.msra.mxu0 %v668
        %1305 = vmatprep.subr.mxu0 0.0
        %1306 = vmatpush1.msra.mxu0 %v669
        %1307 = vmatprep.subr.mxu0 0.0
        %1308 = vmatpush1.msra.mxu0 %v670
        %1309 = vmatprep.subr.mxu0 0.0
        %1310 = vmatpush1.msra.mxu0 %v671
        %1311 = vmatprep.subr.mxu0 0.0
        %1312 = vmatpush1.msra.mxu0 %v672
        %1313 = vmatprep.subr.mxu0 0.0
        %1314 = vmatpush1.msra.mxu0 %v673
        %1315 = vmatprep.subr.mxu0 0.0
        %1316 = vmatpush1.msra.mxu0 %v674
        %1317 = vmatprep.subr.mxu0 0.0
        %1318 = vmatpush1.msra.mxu0 %v675
        %1319 = vmatprep.subr.mxu0 0.0
        %1320 = vmatpush1.msra.mxu0 %v676
        %1321 = vmatprep.subr.mxu0 0.0
        %1322 = vmatpush1.msra.mxu0 %v677
        %1323 = vmatprep.subr.mxu0 0.0
        %1324 = vmatpush1.msra.mxu0 %v678
        %1325 = vmatprep.subr.mxu0 0.0
        %1326 = vmatpush1.msra.mxu0 %v679
        %1327 = vmatprep.subr.mxu0 0.0
        %1328 = vmatpush1.msra.mxu0 %v680
        %1329 = vmatprep.subr.mxu0 0.0
        %1330 = vmatpush1.msra.mxu0 %v681
        %1331 = vmatprep.subr.mxu0 0.0
        %1332 = vmatpush1.msra.mxu0 %v682
        %1333 = vmatprep.subr.mxu0 0.0
        %1334 = vmatpush1.msra.mxu0 %v683
        %1335 = vmatprep.subr.mxu0 0.0
        %1336 = vmatpush1.msra.mxu0 %v684
        %1337 = vmatprep.subr.mxu0 0.0
        %1338 = vmatpush1.msra.mxu0 %v685
        %1339 = vmatprep.subr.mxu0 0.0
        %1340 = vmatpush1.msra.mxu0 %v686
        %1341 = vmatprep.subr.mxu0 0.0
        %1342 = vmatpush1.msra.mxu0 %v687
        %1343 = vmatprep.subr.mxu0 0.0
        %1344 = vmatpush1.msra.mxu0 %v688
        %1345 = vmatprep.subr.mxu0 0.0
        %1346 = vmatpush1.msra.mxu0 %v689
        %1347 = vmatprep.mubr.f32.mxu0 %v1280
        %1348 = vmatmul.mubr.f32.gmra.mrb[0].mxu0 %v1277
        %v1349 = vpop.f32.mrb[0].mxu0
        %v1350 = vadd.f32 %v1265, %v1349
        %v1351 = vpop.f32.mrb[0].mxu0
        %1352 = vdwg.mxu0
        %v1357 = vrot.slane %v918, 7
        %v1358 = vsel %vm763, %v1357, %v913
        %v1359 = vrot.slane %v923, 6
        %v1360 = vsel %vm765, %v1359, %v1358
        %v1361 = vrot.slane %v928, 5
        %v1362 = vsel %vm767, %v1361, %v1360
        %1364 = vmatprep.subr.mxu0 0.0
        %1365 = vmatpush1.msra.mxu0 %v707
        %1366 = vmatprep.subr.mxu0 0.0
        %1367 = vmatpush1.msra.mxu0 %v708
        %1368 = vmatprep.subr.mxu0 0.0
        %1369 = vmatpush1.msra.mxu0 %v709
        %1370 = vmatprep.subr.mxu0 0.0
        %1371 = vmatpush1.msra.mxu0 %v710
        %1372 = vmatprep.subr.mxu0 0.0
        %1373 = vmatpush1.msra.mxu0 %v711
        %1374 = vmatprep.subr.mxu0 0.0
        %1375 = vmatpush1.msra.mxu0 %v712
        %1376 = vmatprep.subr.mxu0 0.0
        %1377 = vmatpush1.msra.mxu0 %v713
        %1378 = vmatprep.subr.mxu0 0.0
        %1379 = vmatpush1.msra.mxu0 %v714
        %1380 = vmatprep.subr.mxu0 0.0
        %1381 = vmatpush1.msra.mxu0 %v715
        %1382 = vmatprep.subr.mxu0 0.0
        %1383 = vmatpush1.msra.mxu0 %v716
        %1384 = vmatprep.subr.mxu0 0.0
        %1385 = vmatpush1.msra.mxu0 %v717
        %1386 = vmatprep.subr.mxu0 0.0
        %1387 = vmatpush1.msra.mxu0 %v718
        %1388 = vmatprep.subr.mxu0 0.0
        %1389 = vmatpush1.msra.mxu0 %v719
        %1390 = vmatprep.subr.mxu0 0.0
        %1391 = vmatpush1.msra.mxu0 %v720
        %1392 = vmatprep.subr.mxu0 0.0
        %1393 = vmatpush1.msra.mxu0 %v721
        %1394 = vmatprep.subr.mxu0 0.0
        %1395 = vmatpush1.msra.mxu0 %v722
        %1396 = vmatprep.subr.mxu0 0.0
        %1397 = vmatpush1.msra.mxu0 0.0
        %1398 = vmatprep.subr.mxu0 0.0
        %1399 = vmatpush1.msra.mxu0 0.0
        %1400 = vmatprep.subr.mxu0 0.0
        %1401 = vmatpush1.msra.mxu0 0.0
        %1402 = vmatprep.subr.mxu0 0.0
        %1403 = vmatpush1.msra.mxu0 0.0
        %1404 = vmatprep.subr.mxu0 0.0
        %1405 = vmatpush1.msra.mxu0 0.0
        %1406 = vmatprep.subr.mxu0 0.0
        %1407 = vmatpush1.msra.mxu0 0.0
        %1408 = vmatprep.subr.mxu0 0.0
        %1409 = vmatpush1.msra.mxu0 0.0
        %1410 = vmatprep.subr.mxu0 0.0
        %1411 = vmatpush1.msra.mxu0 0.0
        %1412 = vmatprep.subr.mxu0 0.0
        %1413 = vmatpush1.msra.mxu0 0.0
        %1414 = vmatprep.subr.mxu0 0.0
        %1415 = vmatpush1.msra.mxu0 0.0
        %1416 = vmatprep.subr.mxu0 0.0
        %1417 = vmatpush1.msra.mxu0 0.0
        %1418 = vmatprep.subr.mxu0 0.0
        %1419 = vmatpush1.msra.mxu0 0.0
        %1420 = vmatprep.subr.mxu0 0.0
        %1421 = vmatpush1.msra.mxu0 0.0
        %1422 = vmatprep.subr.mxu0 0.0
        %1423 = vmatpush1.msra.mxu0 0.0
        %1424 = vmatprep.subr.mxu0 0.0
        %1425 = vmatpush1.msra.mxu0 0.0
        %1426 = vmatprep.subr.mxu0 0.0
        %1427 = vmatpush1.msra.mxu0 0.0
        %1428 = vmatprep.mubr.f32.mxu0 0.0
        %1429 = vmatmul.mubr.f32.gmra.mrb[0].mxu0 %v1362
        %v1430 = vpop.f32.mrb[0].mxu0
        %v1431 = vadd.f32 0.0, %v1430
        %v1432 = vpop.f32.mrb[0].mxu0
        %1433 = vdwg.mxu0
        %1434 = vmatprep.subr.mxu0 0.0
        %1435 = vmatpush1.msra.mxu0 %v691
        %1436 = vmatprep.subr.mxu0 0.0
        %1437 = vmatpush1.msra.mxu0 %v692
        %1438 = vmatprep.subr.mxu0 0.0
        %1439 = vmatpush1.msra.mxu0 %v693
        %1440 = vmatprep.subr.mxu0 0.0
        %1441 = vmatpush1.msra.mxu0 %v694
        %1442 = vmatprep.subr.mxu0 0.0
        %1443 = vmatpush1.msra.mxu0 %v695
        %1444 = vmatprep.subr.mxu0 0.0
        %1445 = vmatpush1.msra.mxu0 %v696
        %1446 = vmatprep.subr.mxu0 0.0
        %1447 = vmatpush1.msra.mxu0 %v697
        %1448 = vmatprep.subr.mxu0 0.0
        %1449 = vmatpush1.msra.mxu0 %v698
        %1450 = vmatprep.subr.mxu0 0.0
        %1451 = vmatpush1.msra.mxu0 %v699
        %1452 = vmatprep.subr.mxu0 0.0
        %1453 = vmatpush1.msra.mxu0 %v700
        %1454 = vmatprep.subr.mxu0 0.0
        %1455 = vmatpush1.msra.mxu0 %v701
        %1456 = vmatprep.subr.mxu0 0.0
        %1457 = vmatpush1.msra.mxu0 %v702
        %1458 = vmatprep.subr.mxu0 0.0
        %1459 = vmatpush1.msra.mxu0 %v703
        %1460 = vmatprep.subr.mxu0 0.0
        %1461 = vmatpush1.msra.mxu0 %v704
        %1462 = vmatprep.subr.mxu0 0.0
        %1463 = vmatpush1.msra.mxu0 %v705
        %1464 = vmatprep.subr.mxu0 0.0
        %1465 = vmatpush1.msra.mxu0 %v706
        %1466 = vmatprep.subr.mxu0 0.0
        %1467 = vmatpush1.msra.mxu0 0.0
        %1468 = vmatprep.subr.mxu0 0.0
        %1469 = vmatpush1.msra.mxu0 0.0
        %1470 = vmatprep.subr.mxu0 0.0
        %1471 = vmatpush1.msra.mxu0 0.0
        %1472 = vmatprep.subr.mxu0 0.0
        %1473 = vmatpush1.msra.mxu0 0.0
        %1474 = vmatprep.subr.mxu0 0.0
        %1475 = vmatpush1.msra.mxu0 0.0
        %1476 = vmatprep.subr.mxu0 0.0
        %1477 = vmatpush1.msra.mxu0 0.0
        %1478 = vmatprep.subr.mxu0 0.0
        %1479 = vmatpush1.msra.mxu0 0.0
        %1480 = vmatprep.subr.mxu0 0.0
        %1481 = vmatpush1.msra.mxu0 0.0
        %1482 = vmatprep.subr.mxu0 0.0
        %1483 = vmatpush1.msra.mxu0 0.0
        %1484 = vmatprep.subr.mxu0 0.0
        %1485 = vmatpush1.msra.mxu0 0.0
        %1486 = vmatprep.subr.mxu0 0.0
        %1487 = vmatpush1.msra.mxu0 0.0
        %1488 = vmatprep.subr.mxu0 0.0
        %1489 = vmatpush1.msra.mxu0 0.0
        %1490 = vmatprep.subr.mxu0 0.0
        %1491 = vmatpush1.msra.mxu0 0.0
        %1492 = vmatprep.subr.mxu0 0.0
        %1493 = vmatpush1.msra.mxu0 0.0
        %1494 = vmatprep.subr.mxu0 0.0
        %1495 = vmatpush1.msra.mxu0 0.0
        %1496 = vmatprep.subr.mxu0 0.0
        %1497 = vmatpush1.msra.mxu0 0.0
        %1498 = vmatprep.mubr.f32.mxu0 0.0
        %1499 = vmatmul.mubr.f32.gmra.mrb[0].mxu0 %v1350
        %v1500 = vpop.f32.mrb[0].mxu0
        %v1501 = vadd.f32 %v1431, %v1500
        %v1502 = vpop.f32.mrb[0].mxu0
        %1503 = vdwg.mxu0
        %v1505 = vlaneseq
        %v1506 = vshrl.u32 %v1505, 7
        %v1507 = vsub.s32 0, %v1506
        %v1508 = vrot.slane %v723, %v1507
        %v1510 = vadd.f32 %v1501, %v1508
        %v1511 = vxor.u32 %v1510, 2147483648
        %v1512 = vmul.f32 %v1511, 1.442695
        %v1513 = vpow.pop %v1512
        %v1514 = vadd.f32 %v1513, 1.0
        %v1515 = vrcp.pop %v1514
        %v1516 = vmul.f32 1.0, %v1515
        %v1519 = vunpack.c.l.s4 1966171168
        %v1520 = vunpack.c.0.s8 %v1519
        %v1521 = vlaneseq
        %v1522 = vshrl.u32 %v1521, 7
        %v1523 = vsub.s32 %v1520, %v1522
        %v1524 = vrot.slane %v1516, %v1523
        %v1525 = vcombine.high %v1524, %v1524
        %v1527 = vunpack.c.l.s4 1966171168
        %v1528 = vunpack.c.0.s8 %v1527
        %v1529 = vlaneseq
        %v1530 = vshrl.u32 %v1529, 7
        %v1531 = vsub.s32 %v1528, %v1530
        %v1532 = vrot.slane %v1524, %v1531
        %v1534 = vunpack.c.l.s4 1966171168
        %v1535 = vunpack.c.0.s8 %v1534
        %v1536 = vlaneseq
        %v1537 = vshrl.u32 %v1536, 7
        %v1538 = vsub.s32 %v1535, %v1537
        %v1539 = vrot.slane %v1525, %v1538
        %v1540 = vcombine.high %v1532, %v1532
        %v1541 = vcombine.high %v1539, %v1539
        %v1546 = vadd.f32 %v1532, 1.0
        %v1547 = vadd.f32 %v1539, 1.0
        %v1548 = vadd.f32 %v1540, 1.0
        %v1549 = vadd.f32 %v1541, 1.0
        %v1554 = vlaneseq
        %v1555 = vshrl.u32 %v1554, 7
        %v1556 = vsub.s32 0, %v1555
        %v1557 = vrot.slane %v1546, %v1556
        %v1558 = vlaneseq
        %v1559 = vshrl.u32 %v1558, 7
        %v1560 = vsub.s32 0, %v1559
        %v1561 = vrot.slane %v1547, %v1560
        %v1562 = vlaneseq
        %v1563 = vshrl.u32 %v1562, 7
        %v1564 = vsub.s32 0, %v1563
        %v1565 = vrot.slane %v1548, %v1564
        %v1566 = vlaneseq
        %v1567 = vshrl.u32 %v1566, 7
        %v1568 = vsub.s32 0, %v1567
        %v1569 = vrot.slane %v1549, %v1568
        %v1574 = vmul.f32 %v596, %v1557
        %v1575 = vmul.f32 %v597, %v1557
        %v1576 = vmul.f32 %v598, %v1561
        %v1577 = vmul.f32 %v599, %v1561
        %v1578 = vmul.f32 %v600, %v1565
        %v1579 = vmul.f32 %v601, %v1565
        %v1580 = vmul.f32 %v602, %v1569
        %v1581 = vmul.f32 %v603, %v1569
        %1582 = vst [vmem:[%s583] sm:$0xff] %v1574
        %1583 = vst [vmem:[%s583 + $0x8] sm:$0xff] %v1575
        %1584 = vst [vmem:[%s583 + $0x10] sm:$0xff] %v1576
        %1585 = vst [vmem:[%s583 + $0x18] sm:$0xff] %v1577
        %1586 = vst [vmem:[%s583 + $0x20] sm:$0xff] %v1578
        %1587 = vst [vmem:[%s583 + $0x28] sm:$0xff] %v1579
        %1588 = vst [vmem:[%s583 + $0x30] sm:$0xff] %v1580
        %1589 = vst [vmem:[%s583 + $0x38] sm:$0xff] %v1581
        %s1590 = sand.u32 %s310, 1
        %s1591 = scalar_lea.sflag [#allocation4], %s1590
        %s1592 = sand.u32 %s310, 1
        %s1593 = smul.addr %s1592, 64
        %s1594 = scalar_lea.vmem [#allocation16], %s1593
        // Predicated region
        $region101: #{tpu_custom_call.1} parent=67 // pred_check
          %p1595 = pneg %p320
        $region102: #{tpu_custom_call.1} parent=67 // pred_check_branch
          %1597 = sbr.rel (%p1595) target = $region104
        $region103: #{tpu_custom_call.1} parent=67 // pred_region
          %s1598 = smul.u32 4, %s35
          %s1600 = ssub.s32 1024, 1024
          %1601 = vsyncadd %s1591, %s1600
          %s1602 = smul.addr %s1598, 2
          %s1603 = smul.addr %s1602, 128
          %s1604 = scalar_lea.hbm %s12, %s1603
          %s1605 = sshll.u32 %s1594, 4
          %s1606 = int_to_ptr.vmem [resolvable:$true] %s1605
          %1611 = dma.vmem_to_hbm [thread:$0]  %s1606, 1024, %s1604, %s1591, 128, 128, 8
        $region104: #{tpu_custom_call.1} parent=67 // pred_fallthru
          _
      $region68: #{tpu_custom_call.1} parent=5 // pred_fallthru
        _
      %p1612 = scmp.le.s32.totalorder 2, %s30
      // Predicated region
      $region105: #{tpu_custom_call.1} parent=5 // pred_check
        %p1613 = pneg %p1612
      $region106: #{tpu_custom_call.1} parent=5 // pred_check_branch
        %1615 = sbr.rel (%p1613) target = $region108
      $region107: #{tpu_custom_call.1} parent=5 // pred_region
        %s1616 = ssub.s32 %s30, 2
        // Predicated region
        $region109: #{tpu_custom_call.1} parent=107 // pred_check
          %p1617 = pneg %p326
        $region110: #{tpu_custom_call.1} parent=107 // pred_check_branch
          %1619 = sbr.rel (%p1617) target = $region112
        $region111: #{tpu_custom_call.1} parent=107 // pred_region
          %s1620 = sand.u32 %s311, 1
          %s1621 = scalar_lea.sflag [#allocation4], %s1620
          %s1622 = sand.u32 %s311, 1
          %s1623 = smul.addr %s1622, 64
          %s1624 = scalar_lea.vmem [#allocation16], %s1623
          %1625 = dma.done %s1621, 1024
        $region112: #{tpu_custom_call.1} parent=107 // pred_fallthru
          _
      $region108: #{tpu_custom_call.1} parent=5 // pred_fallthru
        _
    $region6: #{tpu_custom_call.1} parent=1 // loop_footer
      %s34 = sadd.s32 1, %s30
    $region7: #{tpu_custom_call.1} parent=1 // loop_footer_branch
      %29 = sbr.rel target = $region3
    $region8: #{tpu_custom_call.1} parent=1 // loop_exit
      _
    %1626 = vsyncpa [#allocation3], 1
    %s1627 = scalar_lea.sflag [#allocation3], 1
    %1628 = vsyncpa %s1627, 1
    %1629 = vsyncpa [#allocation6], 1
    %s1630 = scalar_lea.sflag [#allocation6], 1
    %1631 = vsyncpa %s1630, 1
    %1632 = vsyncpa [#allocation9], 1
    %1633 = vsyncpa [#allocation12], 1
    %1634 = vsyncpa [#allocation15], 1
    %1635 = vsyncpa [#allocation4], 1
    %s1636 = scalar_lea.sflag [#allocation4], 1
    %1637 = vsyncpa %s1636, 1

</llo_original>
